<compile_context>
chip_gen: v7x
topology: tpu7x:2x2x1
jax: 0.10.0
libtpu: 0.0.40
codegen_flags: <defaults>
</compile_context>

<pallas_src>
import jax
import jax.numpy as jnp
from jax.experimental import pallas as pl
from jax.experimental.pallas import tpu as pltpu

LANE = 128
SUBLANE = 8
NEG_MASK = -1e30  # finite "minus infinity": exp(NEG_MASK - max) == 0 in f32


def _round_up(n, m):
    return ((n + m - 1) // m) * m


def _cdiv(a, b):
    return (a + b - 1) // b


def make_policy_kernel(layers, action_pad):
    """layers: tuple of (w_row_offset, w_rows, b_row_offset) static Python ints."""
    n_layers = len(layers)

    def kernel(x_ref, p_ref, out_ref):
        h = x_ref[...]                                     # [block_b, state_pad]
        for idx, (w_off, w_rows, b_off) in enumerate(layers):
            w = p_ref[w_off:w_off + w_rows, :]             # [w_rows, 128] static view
            b = p_ref[b_off:b_off + 1, :]                  # [1, 128]
            h = jnp.dot(h, w, preferred_element_type=jnp.float32) + b
            if idx < n_layers - 1:
                h = jnp.maximum(h, 0.0)                    # ReLU
        # Padded action lanes already carry logit == NEG_MASK (baked into the
        # final bias), so no iota/where masking is needed here.
        # logits - max(logits, -1, keepdim) (matches the torch module), softmax.
        h = h - jnp.max(h, axis=-1, keepdims=True)
        e = jnp.exp(h)                                     # padded lanes -> 0
        denom = jnp.sum(e, axis=-1, keepdims=True)
        probs = e * pl.reciprocal(denom, approx=False)     # exact: keeps 1e-5 tol
        # Transposed, sublane-packed store: [action_pad, block_b] instead of
        # [block_b, 128] -> ~16x fewer output HBM bytes, still lane-dense
        # (block_b is a multiple of 128).
        out_ref[...] = jnp.transpose(probs)[:action_pad, :]

    return kernel


def pack_params(params):
    """Pack [(W [in,out], b [out]), ...] into one lane-padded [rows, 128] slab."""
    dims = [(int(W.shape[0]), int(W.shape[1])) for W, _ in params]
    state_dim = dims[0][0]
    # Keep the state padding at 8 sublanes: widening it to 128 only inflates
    # the x DMA 16x with zero compute benefit (the kernel is latency/BW bound).
    state_pad = _round_up(state_dim, SUBLANE)
    in_pads = [state_pad] + [LANE] * (len(params) - 1)

    blocks, layers, row = [], [], 0
    n = len(params)
    for li, ((W, b), in_pad) in enumerate(zip(params, in_pads)):
        fi, fo = W.shape
        assert fo <= LANE and fi <= in_pad, "widths > 128 need lane-tiled weights"
        Wp = jnp.zeros((in_pad, LANE), jnp.float32).at[:fi, :fo].set(W)
        bp = jnp.zeros((SUBLANE, LANE), jnp.float32).at[0, :fo].set(b.reshape(-1))
        if li == n - 1 and fo < LANE:
            # Bake the softmax lane mask into the final bias: padded weight
            # columns are zero, so padded logits become NEG_MASK and vanish
            # under exp automatically.
            bp = bp.at[0, fo:].set(NEG_MASK)
        layers.append((row, in_pad, row + in_pad))
        blocks.extend([Wp, bp])
        row += in_pad + SUBLANE

    slab = jnp.concatenate(blocks, axis=0)                 # [rows, 128]
    meta = dict(layers=tuple(layers), dims=tuple(dims), state_dim=state_dim,
                state_pad=state_pad, action_dim=dims[-1][1],
                action_pad=_round_up(dims[-1][1], SUBLANE))
    return slab, meta


def _params_spec(rows, single_buffer):
    index_map = lambda i: (0, 0)   # constant: slab loads once, stays resident
    if single_buffer:
        try:
            return pl.BlockSpec((rows, LANE), index_map,
                                pipeline_mode=pl.Buffered(1))
        except TypeError:          # jax version without pipeline_mode kwarg
            pass
    return pl.BlockSpec((rows, LANE), index_map)


def policy_forward(x, slab, meta, *, max_block_b=2048):
    B = int(x.shape[0])
    state_dim = meta["state_dim"]
    state_pad = meta["state_pad"]
    action_dim = meta["action_dim"]
    action_pad = meta["action_pad"]
    layers = meta["layers"]
    rows = slab.shape[0]

    # Batch tiling. block_b is always a multiple of 128 so the transposed
    # output store and the in-kernel transpose stay on aligned, lane-dense
    # paths. At large B the grid is an even number (>=2) of equal tiles so the
    # "parallel" axis balances across v7x's two TensorCores.
    if B <= max_block_b:
        n_tiles = 1
        block_b = _round_up(B, LANE)
    else:
        n_tiles = 2 * _cdiv(B, 2 * max_block_b)
        block_b = _round_up(_cdiv(B, n_tiles), LANE)
    b_pad = n_tiles * block_b

    x_pad = jnp.zeros((b_pad, state_pad), jnp.float32).at[:B, :state_dim].set(x)

    sum_w_rows = sum(w_rows for (_, w_rows, _) in layers)
    cost = pl.CostEstimate(
        flops=2 * b_pad * LANE * sum_w_rows,
        transcendentals=b_pad * LANE,
        bytes_accessed=4 * (x_pad.size + slab.size + action_pad * b_pad),
    )

    kernel = make_policy_kernel(layers, action_pad)
    x_spec = pl.BlockSpec((block_b, state_pad), lambda i: (i, 0))
    out_spec = pl.BlockSpec((action_pad, block_b), lambda i: (0, i))
    compiler_params = pltpu.CompilerParams(
        dimension_semantics=("parallel",),
        # Explicit limit: larger blocks still compile under v5e's 16 MiB
        # default scoped-VMEM; 32 MiB is well within every chip's physical VMEM.
        vmem_limit_bytes=32 * 1024 * 1024,
    )

    def run(params_spec):
        return pl.pallas_call(
            kernel,
            out_shape=jax.ShapeDtypeStruct((action_pad, b_pad), jnp.float32),
            grid=(n_tiles,),
            in_specs=[x_spec, params_spec],
            out_specs=out_spec,
            compiler_params=compiler_params,
            cost_estimate=cost,
        )(x_pad, slab)

    try:
        out_t = run(_params_spec(rows, single_buffer=True))
    except Exception:
        # Buffered(1) rejected by this jax/Mosaic version: fall back to the
        # default double-buffered slab (correctness unchanged).
        out_t = run(_params_spec(rows, single_buffer=False))

    return out_t[:action_dim, :B].T


def init_params(key, state_dim, hidden_dim, action_dim):
    """Deterministic synthetic init (uniform, PyTorch-Linear-like fan_in scaling)."""
    dims = [(state_dim, hidden_dim),
            (hidden_dim, hidden_dim),
            (hidden_dim, hidden_dim // 2),
            (hidden_dim // 2, action_dim)]
    params = []
    for fan_in, fan_out in dims:
        key, kw, kb = jax.random.split(key, 3)
        bound = 1.0 / float(fan_in) ** 0.5
        W = jax.random.uniform(kw, (fan_in, fan_out), jnp.float32, -bound, bound)
        b = jax.random.uniform(kb, (fan_out,), jnp.float32, -bound, bound)
        params.append((W, b))
    return params


def policy_ref(x, params):
    h = x
    for i, (W, b) in enumerate(params):
        h = h @ W + b
        if i < len(params) - 1:
            h = jnp.maximum(h, 0.0)
    h = h - jnp.max(h, axis=-1, keepdims=True)
    return jax.nn.softmax(h, axis=-1)


if __name__ == "__main__":
    # CartPole-like: state_dim=4, action_dim=2, module-default hidden_dim=128.
    state_dim, action_dim, hidden_dim, batch = 4, 2, 128, 128

    key = jax.random.PRNGKey(0)
    key, kx = jax.random.split(key)
    x = jax.random.normal(kx, (batch, state_dim), jnp.float32)
    params = init_params(key, state_dim, hidden_dim, action_dim)

    slab, meta = pack_params(params)
    out = policy_forward(x, slab, meta)
    out = jax.block_until_ready(out)

    ref = policy_ref(x, params)
    assert out.shape == (batch, action_dim)
    assert jnp.allclose(out, ref, atol=1e-5, rtol=1e-5)
    assert jnp.allclose(jnp.sum(out, axis=-1), 1.0, atol=1e-5)

    print("KERNEL_OK")
</pallas_src>

<mosaic_0001>
module attributes {stable_mosaic.version = 11 : i64} {
  func.func @kernel(%arg0: i32, %arg1: memref<128x8xf32, #tpu.memory_space<vmem>>, %arg2: memref<424x128xf32, #tpu.memory_space<vmem>>, %arg3: memref<8x128xf32, #tpu.memory_space<vmem>>) attributes {dimension_semantics = [#tpu.dimension_semantics<parallel>], iteration_bounds = array<i64: 1>, scalar_prefetch = 0 : i64, scratch_operands = 0 : i64, tpu.core_type = #tpu.core_type<tc>, window_params = [{transform_indices = @transform_0, window_bounds = array<i64: 128, 8>}, {pipeline_mode = #tpu.pipeline_mode<synchronous>, transform_indices = @transform_1, window_bounds = array<i64: 424, 128>}, {transform_indices = @transform_2, window_bounds = array<i64: 8, 128>}]} {
    %c0 = arith.constant 0 : index
    %c0_0 = arith.constant 0 : index
    %0 = vector.load %arg1[%c0, %c0_0] : memref<128x8xf32, #tpu.memory_space<vmem>>, vector<128x8xf32>
    %c0_1 = arith.constant 0 : index
    %c0_2 = arith.constant 0 : index
    %1 = vector.load %arg2[%c0_1, %c0_2] : memref<424x128xf32, #tpu.memory_space<vmem>>, vector<8x128xf32>
    %c8 = arith.constant 8 : index
    %c0_3 = arith.constant 0 : index
    %2 = vector.load %arg2[%c8, %c0_3] : memref<424x128xf32, #tpu.memory_space<vmem>>, vector<1x128xf32>
    %cst = arith.constant dense<0.000000e+00> : vector<128x128xf32>
    %3 = tpu.matmul %0, %1, %cst {dimension_numbers = #tpu.dot_dimension_numbers<[1], [0], [0], [1], [0, 0, 1, 1], [], []>} : vector<128x8xf32>, vector<8x128xf32>, vector<128x128xf32> -> vector<128x128xf32>
    %4 = vector.broadcast %2 : vector<1x128xf32> to vector<128x128xf32>
    %5 = arith.addf %3, %4 : vector<128x128xf32>
    %cst_4 = arith.constant 0.000000e+00 : f32
    %6 = vector.broadcast %cst_4 : f32 to vector<128x128xf32>
    %7 = arith.maximumf %5, %6 : vector<128x128xf32>
    %c16 = arith.constant 16 : index
    %c0_5 = arith.constant 0 : index
    %8 = vector.load %arg2[%c16, %c0_5] : memref<424x128xf32, #tpu.memory_space<vmem>>, vector<128x128xf32>
    %c144 = arith.constant 144 : index
    %c0_6 = arith.constant 0 : index
    %9 = vector.load %arg2[%c144, %c0_6] : memref<424x128xf32, #tpu.memory_space<vmem>>, vector<1x128xf32>
    %cst_7 = arith.constant dense<0.000000e+00> : vector<128x128xf32>
    %10 = tpu.matmul %7, %8, %cst_7 {dimension_numbers = #tpu.dot_dimension_numbers<[1], [0], [0], [1], [0, 0, 1, 1], [], []>} : vector<128x128xf32>, vector<128x128xf32>, vector<128x128xf32> -> vector<128x128xf32>
    %11 = vector.broadcast %9 : vector<1x128xf32> to vector<128x128xf32>
    %12 = arith.addf %10, %11 : vector<128x128xf32>
    %cst_8 = arith.constant 0.000000e+00 : f32
    %13 = vector.broadcast %cst_8 : f32 to vector<128x128xf32>
    %14 = arith.maximumf %12, %13 : vector<128x128xf32>
    %c152 = arith.constant 152 : index
    %c0_9 = arith.constant 0 : index
    %15 = vector.load %arg2[%c152, %c0_9] : memref<424x128xf32, #tpu.memory_space<vmem>>, vector<128x128xf32>
    %c280 = arith.constant 280 : index
    %c0_10 = arith.constant 0 : index
    %16 = vector.load %arg2[%c280, %c0_10] : memref<424x128xf32, #tpu.memory_space<vmem>>, vector<1x128xf32>
    %cst_11 = arith.constant dense<0.000000e+00> : vector<128x128xf32>
    %17 = tpu.matmul %14, %15, %cst_11 {dimension_numbers = #tpu.dot_dimension_numbers<[1], [0], [0], [1], [0, 0, 1, 1], [], []>} : vector<128x128xf32>, vector<128x128xf32>, vector<128x128xf32> -> vector<128x128xf32>
    %18 = vector.broadcast %16 : vector<1x128xf32> to vector<128x128xf32>
    %19 = arith.addf %17, %18 : vector<128x128xf32>
    %cst_12 = arith.constant 0.000000e+00 : f32
    %20 = vector.broadcast %cst_12 : f32 to vector<128x128xf32>
    %21 = arith.maximumf %19, %20 : vector<128x128xf32>
    %c288 = arith.constant 288 : index
    %c0_13 = arith.constant 0 : index
    %22 = vector.load %arg2[%c288, %c0_13] : memref<424x128xf32, #tpu.memory_space<vmem>>, vector<128x128xf32>
    %c416 = arith.constant 416 : index
    %c0_14 = arith.constant 0 : index
    %23 = vector.load %arg2[%c416, %c0_14] : memref<424x128xf32, #tpu.memory_space<vmem>>, vector<1x128xf32>
    %cst_15 = arith.constant dense<0.000000e+00> : vector<128x128xf32>
    %24 = tpu.matmul %21, %22, %cst_15 {dimension_numbers = #tpu.dot_dimension_numbers<[1], [0], [0], [1], [0, 0, 1, 1], [], []>} : vector<128x128xf32>, vector<128x128xf32>, vector<128x128xf32> -> vector<128x128xf32>
    %25 = vector.broadcast %23 : vector<1x128xf32> to vector<128x128xf32>
    %26 = arith.addf %24, %25 : vector<128x128xf32>
    %cst_16 = arith.constant dense<0xFF800000> : vector<128xf32>
    %27 = vector.multi_reduction <maximumf>, %26, %cst_16 [1] : vector<128x128xf32> to vector<128xf32>
    %28 = vector.shape_cast %27 : vector<128xf32> to vector<128x1xf32>
    %29 = vector.broadcast %28 : vector<128x1xf32> to vector<128x128xf32>
    %30 = arith.subf %26, %29 : vector<128x128xf32>
    %31 = math.exp %30 : vector<128x128xf32>
    %cst_17 = arith.constant dense<0.000000e+00> : vector<128xf32>
    %32 = vector.multi_reduction <add>, %31, %cst_17 [1] : vector<128x128xf32> to vector<128xf32>
    %33 = vector.shape_cast %32 : vector<128xf32> to vector<128x1xf32>
    %34 = tpu.reciprocal %33 : vector<128x1xf32> -> vector<128x1xf32>
    %35 = vector.broadcast %34 : vector<128x1xf32> to vector<128x128xf32>
    %36 = arith.mulf %31, %35 : vector<128x128xf32>
    %37 = tpu.transpose %36, [1, 0] : vector<128x128xf32> -> vector<128x128xf32>
    %38 = vector.extract_strided_slice %37 {offsets = [0, 0], sizes = [8, 128], strides = [1, 1]} : vector<128x128xf32> to vector<8x128xf32>
    %c0_18 = arith.constant 0 : index
    %c0_19 = arith.constant 0 : index
    %39 = vector.load %arg3[%c0_18, %c0_19] : memref<8x128xf32, #tpu.memory_space<vmem>>, vector<8x128xf32>
    tpu.vector_store %arg3[%c0_18, %c0_19], %38 {strides = array<i32>} : memref<8x128xf32, #tpu.memory_space<vmem>>, vector<8x128xf32>,
    return
  }
  func.func @transform_0(%arg0: i32) -> (i32, i32) {
    %c0_i32 = arith.constant 0 : i32
    %c0_i32_0 = arith.constant 0 : i32
    return %arg0, %c0_i32 : i32, i32
  }
  func.func @transform_1(%arg0: i32) -> (i32, i32) {
    %c0_i32 = arith.constant 0 : i32
    %c0_i32_0 = arith.constant 0 : i32
    %c0_i32_1 = arith.constant 0 : i32
    return %c0_i32, %c0_i32_0 : i32, i32
  }
  func.func @transform_2(%arg0: i32) -> (i32, i32) {
    %c0_i32 = arith.constant 0 : i32
    %c0_i32_0 = arith.constant 0 : i32
    return %c0_i32, %arg0 : i32, i32
  }
}

module attributes {stable_mosaic.version = 11 : i64} {
  func.func @kernel(%arg0: i32, %arg1: memref<128x8xf32, #tpu.memory_space<vmem>>, %arg2: memref<424x128xf32, #tpu.memory_space<vmem>>, %arg3: memref<8x128xf32, #tpu.memory_space<vmem>>) attributes {dimension_semantics = [#tpu.dimension_semantics<parallel>], iteration_bounds = array<i64: 1>, scalar_prefetch = 0 : i64, scratch_operands = 0 : i64, tpu.core_type = #tpu.core_type<tc>, window_params = [{transform_indices = @transform_0, window_bounds = array<i64: 128, 8>}, {pipeline_mode = #tpu.pipeline_mode<synchronous>, transform_indices = @transform_1, window_bounds = array<i64: 424, 128>}, {transform_indices = @transform_2, window_bounds = array<i64: 8, 128>}]} {
    %c0 = arith.constant 0 : index
    %c0_0 = arith.constant 0 : index
    %0 = vector.load %arg1[%c0, %c0_0] : memref<128x8xf32, #tpu.memory_space<vmem>>, vector<128x8xf32>
    %c0_1 = arith.constant 0 : index
    %c0_2 = arith.constant 0 : index
    %1 = vector.load %arg2[%c0_1, %c0_2] : memref<424x128xf32, #tpu.memory_space<vmem>>, vector<8x128xf32>
    %c8 = arith.constant 8 : index
    %c0_3 = arith.constant 0 : index
    %2 = vector.load %arg2[%c8, %c0_3] : memref<424x128xf32, #tpu.memory_space<vmem>>, vector<1x128xf32>
    %cst = arith.constant dense<0.000000e+00> : vector<128x128xf32>
    %3 = tpu.matmul %0, %1, %cst {dimension_numbers = #tpu.dot_dimension_numbers<[1], [0], [0], [1], [0, 0, 1, 1], [], []>} : vector<128x8xf32>, vector<8x128xf32>, vector<128x128xf32> -> vector<128x128xf32>
    %4 = vector.broadcast %2 : vector<1x128xf32> to vector<128x128xf32>
    %5 = arith.addf %3, %4 : vector<128x128xf32>
    %cst_4 = arith.constant 0.000000e+00 : f32
    %6 = vector.broadcast %cst_4 : f32 to vector<128x128xf32>
    %7 = arith.maximumf %5, %6 : vector<128x128xf32>
    %c16 = arith.constant 16 : index
    %c0_5 = arith.constant 0 : index
    %8 = vector.load %arg2[%c16, %c0_5] : memref<424x128xf32, #tpu.memory_space<vmem>>, vector<128x128xf32>
    %c144 = arith.constant 144 : index
    %c0_6 = arith.constant 0 : index
    %9 = vector.load %arg2[%c144, %c0_6] : memref<424x128xf32, #tpu.memory_space<vmem>>, vector<1x128xf32>
    %cst_7 = arith.constant dense<0.000000e+00> : vector<128x128xf32>
    %10 = tpu.matmul %7, %8, %cst_7 {dimension_numbers = #tpu.dot_dimension_numbers<[1], [0], [0], [1], [0, 0, 1, 1], [], []>} : vector<128x128xf32>, vector<128x128xf32>, vector<128x128xf32> -> vector<128x128xf32>
    %11 = vector.broadcast %9 : vector<1x128xf32> to vector<128x128xf32>
    %12 = arith.addf %10, %11 : vector<128x128xf32>
    %cst_8 = arith.constant 0.000000e+00 : f32
    %13 = vector.broadcast %cst_8 : f32 to vector<128x128xf32>
    %14 = arith.maximumf %12, %13 : vector<128x128xf32>
    %c152 = arith.constant 152 : index
    %c0_9 = arith.constant 0 : index
    %15 = vector.load %arg2[%c152, %c0_9] : memref<424x128xf32, #tpu.memory_space<vmem>>, vector<128x128xf32>
    %c280 = arith.constant 280 : index
    %c0_10 = arith.constant 0 : index
    %16 = vector.load %arg2[%c280, %c0_10] : memref<424x128xf32, #tpu.memory_space<vmem>>, vector<1x128xf32>
    %cst_11 = arith.constant dense<0.000000e+00> : vector<128x128xf32>
    %17 = tpu.matmul %14, %15, %cst_11 {dimension_numbers = #tpu.dot_dimension_numbers<[1], [0], [0], [1], [0, 0, 1, 1], [], []>} : vector<128x128xf32>, vector<128x128xf32>, vector<128x128xf32> -> vector<128x128xf32>
    %18 = vector.broadcast %16 : vector<1x128xf32> to vector<128x128xf32>
    %19 = arith.addf %17, %18 : vector<128x128xf32>
    %cst_12 = arith.constant 0.000000e+00 : f32
    %20 = vector.broadcast %cst_12 : f32 to vector<128x128xf32>
    %21 = arith.maximumf %19, %20 : vector<128x128xf32>
    %c288 = arith.constant 288 : index
    %c0_13 = arith.constant 0 : index
    %22 = vector.load %arg2[%c288, %c0_13] : memref<424x128xf32, #tpu.memory_space<vmem>>, vector<128x128xf32>
    %c416 = arith.constant 416 : index
    %c0_14 = arith.constant 0 : index
    %23 = vector.load %arg2[%c416, %c0_14] : memref<424x128xf32, #tpu.memory_space<vmem>>, vector<1x128xf32>
    %cst_15 = arith.constant dense<0.000000e+00> : vector<128x128xf32>
    %24 = tpu.matmul %21, %22, %cst_15 {dimension_numbers = #tpu.dot_dimension_numbers<[1], [0], [0], [1], [0, 0, 1, 1], [], []>} : vector<128x128xf32>, vector<128x128xf32>, vector<128x128xf32> -> vector<128x128xf32>
    %25 = vector.broadcast %23 : vector<1x128xf32> to vector<128x128xf32>
    %26 = arith.addf %24, %25 : vector<128x128xf32>
    %cst_16 = arith.constant dense<0xFF800000> : vector<128xf32>
    %27 = vector.multi_reduction <maximumf>, %26, %cst_16 [1] : vector<128x128xf32> to vector<128xf32>
    %28 = vector.shape_cast %27 : vector<128xf32> to vector<128x1xf32>
    %29 = vector.broadcast %28 : vector<128x1xf32> to vector<128x128xf32>
    %30 = arith.subf %26, %29 : vector<128x128xf32>
    %31 = math.exp %30 : vector<128x128xf32>
    %cst_17 = arith.constant dense<0.000000e+00> : vector<128xf32>
    %32 = vector.multi_reduction <add>, %31, %cst_17 [1] : vector<128x128xf32> to vector<128xf32>
    %33 = vector.shape_cast %32 : vector<128xf32> to vector<128x1xf32>
    %34 = tpu.reciprocal %33 : vector<128x1xf32> -> vector<128x1xf32>
    %35 = vector.broadcast %34 : vector<128x1xf32> to vector<128x128xf32>
    %36 = arith.mulf %31, %35 : vector<128x128xf32>
    %37 = tpu.transpose %36, [1, 0] : vector<128x128xf32> -> vector<128x128xf32>
    %38 = vector.extract_strided_slice %37 {offsets = [0, 0], sizes = [8, 128], strides = [1, 1]} : vector<128x128xf32> to vector<8x128xf32>
    %c0_18 = arith.constant 0 : index
    %c0_19 = arith.constant 0 : index
    %39 = vector.load %arg3[%c0_18, %c0_19] : memref<8x128xf32, #tpu.memory_space<vmem>>, vector<8x128xf32>
    tpu.vector_store %arg3[%c0_18, %c0_19], %38 {strides = array<i32>} : memref<8x128xf32, #tpu.memory_space<vmem>>, vector<8x128xf32>,
    return
  }
  func.func @transform_0(%arg0: i32) -> (i32, i32) {
    %c0_i32 = arith.constant 0 : i32
    %c0_i32_0 = arith.constant 0 : i32
    return %arg0, %c0_i32 : i32, i32
  }
  func.func @transform_1(%arg0: i32) -> (i32, i32) {
    %c0_i32 = arith.constant 0 : i32
    %c0_i32_0 = arith.constant 0 : i32
    %c0_i32_1 = arith.constant 0 : i32
    return %c0_i32, %c0_i32_0 : i32, i32
  }
  func.func @transform_2(%arg0: i32) -> (i32, i32) {
    %c0_i32 = arith.constant 0 : i32
    %c0_i32_0 = arith.constant 0 : i32
    return %c0_i32, %arg0 : i32, i32
  }
}

</mosaic_0001>

<llo_original>
// kernel: tpu_custom_call.1
$region0: #{tpu_custom_call.1}
  #allocation0 [shape = 'u32[]', space=smem, size = 0x4, offset = 0x4, fixed_abs, tag = 'smem constant byte address 0x4 - core index']
  #allocation1 [shape = 'u32[144,128]{1,0:T(1,128)}', space=vmem, size = 0x12000, scoped, tag = 'internal scratch']
  %s0 = inlined_call_operand.vmem [shape: f32[128,8], index: 0, kind: input, shape index: {}]
  %s1 = inlined_call_operand.hbm [shape: f32[424,128], index: 1, kind: input, shape index: {}]
  %s2 = inlined_call_operand.hbm [shape: f32[8,128], index: 2, kind: output, shape index: {}]
  %s3 = sld [smem:[#allocation0]]
  $region22: #{tpu_custom_call.1} parent=0
    _
  %s5 = ssub.s32 1, %s3
  %s6 = scalar_select 0, %s5, %s3
  $region1: #{tpu_custom_call.1} parent=0
    #allocation2 [shape = 'u8[217088]{0}', space=vmem, size = 0x35000, scoped, tag = 'input window, operand 1, single buffered']
    #allocation3 [shape = 's32[1]{0}', space=sflag, size = 0x4, scoped, tag = 'scoped memory for tpu_custom_call.1']
    #allocation4 [shape = 's32[1]{0}', space=sflag, size = 0x4, scoped, tag = 'scoped memory for tpu_custom_call.1']
    #allocation5 [shape = 'u8[4096]{0}', space=vmem, size = 0x1000, scoped, tag = 'output window, operand 0, single buffered']
    %7 = vsyncpa [#allocation3], 0
    %8 = vsyncpa [#allocation4], 0
    // Predicated region
    $region2: #{tpu_custom_call.1} parent=1 // pred_check
      _
    $region3: #{tpu_custom_call.1} parent=1 // pred_check_branch
      %10 = sbr.rel (0) target = $region5
    $region4: #{tpu_custom_call.1} parent=1 // pred_region
      _
    $region5: #{tpu_custom_call.1} parent=1 // pred_fallthru
      _
    // Predicated region
    $region6: #{tpu_custom_call.1} parent=1 // pred_check
      _
    $region7: #{tpu_custom_call.1} parent=1 // pred_check_branch
      %12 = sbr.rel (0) target = $region9
    $region8: #{tpu_custom_call.1} parent=1 // pred_region
      %s14 = ssub.s32 6784, 6784
      %15 = vsyncadd [#allocation3], %s14
      %s16 = sshll.u32 [#allocation2], 4
      %s17 = int_to_ptr.vmem [resolvable:$true] %s16
      %22 = dma.hbm_to_vmem [thread:$0]  %s1, 6784, %s17, [#allocation3], 128, 128, 8
    $region9: #{tpu_custom_call.1} parent=1 // pred_fallthru
      _
    // Predicated region
    $region10: #{tpu_custom_call.1} parent=1 // pred_check
      _
    $region11: #{tpu_custom_call.1} parent=1 // pred_check_branch
      %24 = sbr.rel (0) target = $region13
    $region12: #{tpu_custom_call.1} parent=1 // pred_region
      %25 = dma.done [#allocation3], 6784
    $region13: #{tpu_custom_call.1} parent=1 // pred_fallthru
      _
    %v26 = vld [vmem:[%s0] sm:$0xff]
    %v27 = vld [vmem:[%s0 + $0x8] sm:$0xff]
    %v28 = vld [vmem:[%s0 + $0x10] sm:$0xff]
    %v29 = vld [vmem:[%s0 + $0x18] sm:$0xff]
    %v30 = vld [vmem:[%s0 + $0x20] sm:$0xff]
    %v31 = vld [vmem:[%s0 + $0x28] sm:$0xff]
    %v32 = vld [vmem:[%s0 + $0x30] sm:$0xff]
    %v33 = vld [vmem:[%s0 + $0x38] sm:$0xff]
    %v34 = vld [vmem:[%s0 + $0x40] sm:$0xff]
    %v35 = vld [vmem:[%s0 + $0x48] sm:$0xff]
    %v36 = vld [vmem:[%s0 + $0x50] sm:$0xff]
    %v37 = vld [vmem:[%s0 + $0x58] sm:$0xff]
    %v38 = vld [vmem:[%s0 + $0x60] sm:$0xff]
    %v39 = vld [vmem:[%s0 + $0x68] sm:$0xff]
    %v40 = vld [vmem:[%s0 + $0x70] sm:$0xff]
    %v41 = vld [vmem:[%s0 + $0x78] sm:$0xff]
    %v42 = vld [vmem:[#allocation2] sm:$0xff]
    %v43 = vld [vmem:[#allocation2 + $0x8] sm:$0x1]
    %v44 = vlaneseq
    %v45 = vshrl.u32 %v44, 7
    %v46 = vsub.s32 0, %v45
    %v47 = vrot.slane %v43, %v46
    %vm48 = vcmask 64512
    %v50 = vsel %vm48, %v26, 0
    %v53 = vsel %vm48, %v27, 0
    %v56 = vsel %vm48, %v28, 0
    %v59 = vsel %vm48, %v29, 0
    %v62 = vsel %vm48, %v30, 0
    %v65 = vsel %vm48, %v31, 0
    %v68 = vsel %vm48, %v32, 0
    %v71 = vsel %vm48, %v33, 0
    %v74 = vsel %vm48, %v34, 0
    %v77 = vsel %vm48, %v35, 0
    %v80 = vsel %vm48, %v36, 0
    %v83 = vsel %vm48, %v37, 0
    %v86 = vsel %vm48, %v38, 0
    %v89 = vsel %vm48, %v39, 0
    %v92 = vsel %vm48, %v40, 0
    %v95 = vsel %vm48, %v41, 0
    %97 = vmatprep.subr.mxu0 0.0
    %98 = vmatpush1.msra.mxu0 %v42
    %99 = vmatprep.subr.mxu0 0.0
    %100 = vmatpush1.msra.mxu0 0.0
    %101 = vmatprep.subr.mxu0 0.0
    %102 = vmatpush1.msra.mxu0 0.0
    %103 = vmatprep.subr.mxu0 0.0
    %104 = vmatpush1.msra.mxu0 0.0
    %105 = vmatprep.subr.mxu0 0.0
    %106 = vmatpush1.msra.mxu0 0.0
    %107 = vmatprep.subr.mxu0 0.0
    %108 = vmatpush1.msra.mxu0 0.0
    %109 = vmatprep.subr.mxu0 0.0
    %110 = vmatpush1.msra.mxu0 0.0
    %111 = vmatprep.subr.mxu0 0.0
    %112 = vmatpush1.msra.mxu0 0.0
    %113 = vmatprep.subr.mxu0 0.0
    %114 = vmatpush1.msra.mxu0 0.0
    %115 = vmatprep.subr.mxu0 0.0
    %116 = vmatpush1.msra.mxu0 0.0
    %117 = vmatprep.subr.mxu0 0.0
    %118 = vmatpush1.msra.mxu0 0.0
    %119 = vmatprep.subr.mxu0 0.0
    %120 = vmatpush1.msra.mxu0 0.0
    %121 = vmatprep.subr.mxu0 0.0
    %122 = vmatpush1.msra.mxu0 0.0
    %123 = vmatprep.subr.mxu0 0.0
    %124 = vmatpush1.msra.mxu0 0.0
    %125 = vmatprep.subr.mxu0 0.0
    %126 = vmatpush1.msra.mxu0 0.0
    %127 = vmatprep.subr.mxu0 0.0
    %128 = vmatpush1.msra.mxu0 0.0
    %129 = vmatprep.subr.mxu0 0.0
    %130 = vmatpush1.msra.mxu0 0.0
    %131 = vmatprep.subr.mxu0 0.0
    %132 = vmatpush1.msra.mxu0 0.0
    %133 = vmatprep.subr.mxu0 0.0
    %134 = vmatpush1.msra.mxu0 0.0
    %135 = vmatprep.subr.mxu0 0.0
    %136 = vmatpush1.msra.mxu0 0.0
    %137 = vmatprep.subr.mxu0 0.0
    %138 = vmatpush1.msra.mxu0 0.0
    %139 = vmatprep.subr.mxu0 0.0
    %140 = vmatpush1.msra.mxu0 0.0
    %141 = vmatprep.subr.mxu0 0.0
    %142 = vmatpush1.msra.mxu0 0.0
    %143 = vmatprep.subr.mxu0 0.0
    %144 = vmatpush1.msra.mxu0 0.0
    %145 = vmatprep.subr.mxu0 0.0
    %146 = vmatpush1.msra.mxu0 0.0
    %147 = vmatprep.subr.mxu0 0.0
    %148 = vmatpush1.msra.mxu0 0.0
    %149 = vmatprep.subr.mxu0 0.0
    %150 = vmatpush1.msra.mxu0 0.0
    %151 = vmatprep.subr.mxu0 0.0
    %152 = vmatpush1.msra.mxu0 0.0
    %153 = vmatprep.subr.mxu0 0.0
    %154 = vmatpush1.msra.mxu0 0.0
    %155 = vmatprep.subr.mxu0 0.0
    %156 = vmatpush1.msra.mxu0 0.0
    %157 = vmatprep.subr.mxu0 0.0
    %158 = vmatpush1.msra.mxu0 0.0
    %159 = vmatprep.subr.mxu0 0.0
    %160 = vmatpush1.msra.mxu0 0.0
    %161 = vmatprep.mubr.f32.mxu0 0.0
    %162 = vmatmul.mubr.f32.gmra.mrb[0].mxu0 %v50
    %v163 = vpop.f32.mrb[0].mxu0
    %v164 = vadd.f32 %v47, %v163
    %v165 = vpop.f32.mrb[0].mxu0
    %166 = vmatprep.mubr.f32.mxu0 0.0
    %167 = vmatmul.mubr.f32.gmra.mrb[0].mxu0 %v53
    %v168 = vpop.f32.mrb[0].mxu0
    %v169 = vadd.f32 %v47, %v168
    %v170 = vpop.f32.mrb[0].mxu0
    %171 = vmatprep.mubr.f32.mxu0 0.0
    %172 = vmatmul.mubr.f32.gmra.mrb[0].mxu0 %v56
    %v173 = vpop.f32.mrb[0].mxu0
    %v174 = vadd.f32 %v47, %v173
    %v175 = vpop.f32.mrb[0].mxu0
    %176 = vmatprep.mubr.f32.mxu0 0.0
    %177 = vmatmul.mubr.f32.gmra.mrb[0].mxu0 %v59
    %v178 = vpop.f32.mrb[0].mxu0
    %v179 = vadd.f32 %v47, %v178
    %v180 = vpop.f32.mrb[0].mxu0
    %181 = vmatprep.mubr.f32.mxu0 0.0
    %182 = vmatmul.mubr.f32.gmra.mrb[0].mxu0 %v62
    %v183 = vpop.f32.mrb[0].mxu0
    %v184 = vadd.f32 %v47, %v183
    %v185 = vpop.f32.mrb[0].mxu0
    %186 = vmatprep.mubr.f32.mxu0 0.0
    %187 = vmatmul.mubr.f32.gmra.mrb[0].mxu0 %v65
    %v188 = vpop.f32.mrb[0].mxu0
    %v189 = vadd.f32 %v47, %v188
    %v190 = vpop.f32.mrb[0].mxu0
    %191 = vmatprep.mubr.f32.mxu0 0.0
    %192 = vmatmul.mubr.f32.gmra.mrb[0].mxu0 %v68
    %v193 = vpop.f32.mrb[0].mxu0
    %v194 = vadd.f32 %v47, %v193
    %v195 = vpop.f32.mrb[0].mxu0
    %196 = vmatprep.mubr.f32.mxu0 0.0
    %197 = vmatmul.mubr.f32.gmra.mrb[0].mxu0 %v71
    %v198 = vpop.f32.mrb[0].mxu0
    %v199 = vadd.f32 %v47, %v198
    %v200 = vpop.f32.mrb[0].mxu0
    %201 = vmatprep.mubr.f32.mxu0 0.0
    %202 = vmatmul.mubr.f32.gmra.mrb[0].mxu0 %v74
    %v203 = vpop.f32.mrb[0].mxu0
    %v204 = vadd.f32 %v47, %v203
    %v205 = vpop.f32.mrb[0].mxu0
    %206 = vmatprep.mubr.f32.mxu0 0.0
    %207 = vmatmul.mubr.f32.gmra.mrb[0].mxu0 %v77
    %v208 = vpop.f32.mrb[0].mxu0
    %v209 = vadd.f32 %v47, %v208
    %v210 = vpop.f32.mrb[0].mxu0
    %211 = vmatprep.mubr.f32.mxu0 0.0
    %212 = vmatmul.mubr.f32.gmra.mrb[0].mxu0 %v80
    %v213 = vpop.f32.mrb[0].mxu0
    %v214 = vadd.f32 %v47, %v213
    %v215 = vpop.f32.mrb[0].mxu0
    %216 = vmatprep.mubr.f32.mxu0 0.0
    %217 = vmatmul.mubr.f32.gmra.mrb[0].mxu0 %v83
    %v218 = vpop.f32.mrb[0].mxu0
    %v219 = vadd.f32 %v47, %v218
    %v220 = vpop.f32.mrb[0].mxu0
    %221 = vmatprep.mubr.f32.mxu0 0.0
    %222 = vmatmul.mubr.f32.gmra.mrb[0].mxu0 %v86
    %v223 = vpop.f32.mrb[0].mxu0
    %v224 = vadd.f32 %v47, %v223
    %v225 = vpop.f32.mrb[0].mxu0
    %226 = vmatprep.mubr.f32.mxu0 0.0
    %227 = vmatmul.mubr.f32.gmra.mrb[0].mxu0 %v89
    %v228 = vpop.f32.mrb[0].mxu0
    %v229 = vadd.f32 %v47, %v228
    %v230 = vpop.f32.mrb[0].mxu0
    %231 = vmatprep.mubr.f32.mxu0 0.0
    %232 = vmatmul.mubr.f32.gmra.mrb[0].mxu0 %v92
    %v233 = vpop.f32.mrb[0].mxu0
    %v234 = vadd.f32 %v47, %v233
    %v235 = vpop.f32.mrb[0].mxu0
    %236 = vmatprep.mubr.f32.mxu0 0.0
    %237 = vmatmul.mubr.f32.gmra.mrb[0].mxu0 %v95
    %v238 = vpop.f32.mrb[0].mxu0
    %v239 = vadd.f32 %v47, %v238
    %v240 = vpop.f32.mrb[0].mxu0
    %241 = vdwg.mxu0
    %v242 = vmax.f32 %v164, 0.0
    %v243 = vmax.f32 %v169, 0.0
    %v244 = vmax.f32 %v174, 0.0
    %v245 = vmax.f32 %v179, 0.0
    %v246 = vmax.f32 %v184, 0.0
    %v247 = vmax.f32 %v189, 0.0
    %v248 = vmax.f32 %v194, 0.0
    %v249 = vmax.f32 %v199, 0.0
    %v250 = vmax.f32 %v204, 0.0
    %v251 = vmax.f32 %v209, 0.0
    %v252 = vmax.f32 %v214, 0.0
    %v253 = vmax.f32 %v219, 0.0
    %v254 = vmax.f32 %v224, 0.0
    %v255 = vmax.f32 %v229, 0.0
    %v256 = vmax.f32 %v234, 0.0
    %v257 = vmax.f32 %v239, 0.0
    %v258 = vld [vmem:[#allocation2 + $0x10] sm:$0xff]
    %v259 = vld [vmem:[#allocation2 + $0x18] sm:$0xff]
    %v260 = vld [vmem:[#allocation2 + $0x20] sm:$0xff]
    %v261 = vld [vmem:[#allocation2 + $0x28] sm:$0xff]
    %v262 = vld [vmem:[#allocation2 + $0x30] sm:$0xff]
    %v263 = vld [vmem:[#allocation2 + $0x38] sm:$0xff]
    %v264 = vld [vmem:[#allocation2 + $0x40] sm:$0xff]
    %v265 = vld [vmem:[#allocation2 + $0x48] sm:$0xff]
    %v266 = vld [vmem:[#allocation2 + $0x50] sm:$0xff]
    %v267 = vld [vmem:[#allocation2 + $0x58] sm:$0xff]
    %v268 = vld [vmem:[#allocation2 + $0x60] sm:$0xff]
    %v269 = vld [vmem:[#allocation2 + $0x68] sm:$0xff]
    %v270 = vld [vmem:[#allocation2 + $0x70] sm:$0xff]
    %v271 = vld [vmem:[#allocation2 + $0x78] sm:$0xff]
    %v272 = vld [vmem:[#allocation2 + $0x80] sm:$0xff]
    %v273 = vld [vmem:[#allocation2 + $0x88] sm:$0xff]
    %v274 = vld [vmem:[#allocation2 + $0x90] sm:$0x1]
    %v275 = vlaneseq
    %v276 = vshrl.u32 %v275, 7
    %v277 = vsub.s32 0, %v276
    %v278 = vrot.slane %v274, %v277
    %279 = vmatprep.subr.mxu0 0.0
    %280 = vmatpush1.msra.mxu0 %v258
    %281 = vmatprep.subr.mxu0 0.0
    %282 = vmatpush1.msra.mxu0 %v259
    %283 = vmatprep.subr.mxu0 0.0
    %284 = vmatpush1.msra.mxu0 %v260
    %285 = vmatprep.subr.mxu0 0.0
    %286 = vmatpush1.msra.mxu0 %v261
    %287 = vmatprep.subr.mxu0 0.0
    %288 = vmatpush1.msra.mxu0 %v262
    %289 = vmatprep.subr.mxu0 0.0
    %290 = vmatpush1.msra.mxu0 %v263
    %291 = vmatprep.subr.mxu0 0.0
    %292 = vmatpush1.msra.mxu0 %v264
    %293 = vmatprep.subr.mxu0 0.0
    %294 = vmatpush1.msra.mxu0 %v265
    %295 = vmatprep.subr.mxu0 0.0
    %296 = vmatpush1.msra.mxu0 %v266
    %297 = vmatprep.subr.mxu0 0.0
    %298 = vmatpush1.msra.mxu0 %v267
    %299 = vmatprep.subr.mxu0 0.0
    %300 = vmatpush1.msra.mxu0 %v268
    %301 = vmatprep.subr.mxu0 0.0
    %302 = vmatpush1.msra.mxu0 %v269
    %303 = vmatprep.subr.mxu0 0.0
    %304 = vmatpush1.msra.mxu0 %v270
    %305 = vmatprep.subr.mxu0 0.0
    %306 = vmatpush1.msra.mxu0 %v271
    %307 = vmatprep.subr.mxu0 0.0
    %308 = vmatpush1.msra.mxu0 %v272
    %309 = vmatprep.subr.mxu0 0.0
    %310 = vmatpush1.msra.mxu0 %v273
    %311 = vmatprep.subr.mxu0 0.0
    %312 = vmatpush1.msra.mxu0 0.0
    %313 = vmatprep.subr.mxu0 0.0
    %314 = vmatpush1.msra.mxu0 0.0
    %315 = vmatprep.subr.mxu0 0.0
    %316 = vmatpush1.msra.mxu0 0.0
    %317 = vmatprep.subr.mxu0 0.0
    %318 = vmatpush1.msra.mxu0 0.0
    %319 = vmatprep.subr.mxu0 0.0
    %320 = vmatpush1.msra.mxu0 0.0
    %321 = vmatprep.subr.mxu0 0.0
    %322 = vmatpush1.msra.mxu0 0.0
    %323 = vmatprep.subr.mxu0 0.0
    %324 = vmatpush1.msra.mxu0 0.0
    %325 = vmatprep.subr.mxu0 0.0
    %326 = vmatpush1.msra.mxu0 0.0
    %327 = vmatprep.subr.mxu0 0.0
    %328 = vmatpush1.msra.mxu0 0.0
    %329 = vmatprep.subr.mxu0 0.0
    %330 = vmatpush1.msra.mxu0 0.0
    %331 = vmatprep.subr.mxu0 0.0
    %332 = vmatpush1.msra.mxu0 0.0
    %333 = vmatprep.subr.mxu0 0.0
    %334 = vmatpush1.msra.mxu0 0.0
    %335 = vmatprep.subr.mxu0 0.0
    %336 = vmatpush1.msra.mxu0 0.0
    %337 = vmatprep.subr.mxu0 0.0
    %338 = vmatpush1.msra.mxu0 0.0
    %339 = vmatprep.subr.mxu0 0.0
    %340 = vmatpush1.msra.mxu0 0.0
    %341 = vmatprep.subr.mxu0 0.0
    %342 = vmatpush1.msra.mxu0 0.0
    %343 = vmatprep.mubr.f32.mxu0 0.0
    %344 = vmatmul.mubr.f32.gmra.mrb[0].mxu0 %v242
    %v345 = vpop.f32.mrb[0].mxu0
    %v346 = vadd.f32 %v278, %v345
    %v347 = vpop.f32.mrb[0].mxu0
    %348 = vmatprep.mubr.f32.mxu0 0.0
    %349 = vmatmul.mubr.f32.gmra.mrb[0].mxu0 %v243
    %v350 = vpop.f32.mrb[0].mxu0
    %v351 = vadd.f32 %v278, %v350
    %v352 = vpop.f32.mrb[0].mxu0
    %353 = vmatprep.mubr.f32.mxu0 0.0
    %354 = vmatmul.mubr.f32.gmra.mrb[0].mxu0 %v244
    %v355 = vpop.f32.mrb[0].mxu0
    %v356 = vadd.f32 %v278, %v355
    %v357 = vpop.f32.mrb[0].mxu0
    %358 = vmatprep.mubr.f32.mxu0 0.0
    %359 = vmatmul.mubr.f32.gmra.mrb[0].mxu0 %v245
    %v360 = vpop.f32.mrb[0].mxu0
    %v361 = vadd.f32 %v278, %v360
    %v362 = vpop.f32.mrb[0].mxu0
    %363 = vmatprep.mubr.f32.mxu0 0.0
    %364 = vmatmul.mubr.f32.gmra.mrb[0].mxu0 %v246
    %v365 = vpop.f32.mrb[0].mxu0
    %v366 = vadd.f32 %v278, %v365
    %v367 = vpop.f32.mrb[0].mxu0
    %368 = vmatprep.mubr.f32.mxu0 0.0
    %369 = vmatmul.mubr.f32.gmra.mrb[0].mxu0 %v247
    %v370 = vpop.f32.mrb[0].mxu0
    %v371 = vadd.f32 %v278, %v370
    %v372 = vpop.f32.mrb[0].mxu0
    %373 = vmatprep.mubr.f32.mxu0 0.0
    %374 = vmatmul.mubr.f32.gmra.mrb[0].mxu0 %v248
    %v375 = vpop.f32.mrb[0].mxu0
    %v376 = vadd.f32 %v278, %v375
    %v377 = vpop.f32.mrb[0].mxu0
    %378 = vmatprep.mubr.f32.mxu0 0.0
    %379 = vmatmul.mubr.f32.gmra.mrb[0].mxu0 %v249
    %v380 = vpop.f32.mrb[0].mxu0
    %v381 = vadd.f32 %v278, %v380
    %v382 = vpop.f32.mrb[0].mxu0
    %383 = vmatprep.mubr.f32.mxu0 0.0
    %384 = vmatmul.mubr.f32.gmra.mrb[0].mxu0 %v250
    %v385 = vpop.f32.mrb[0].mxu0
    %v386 = vadd.f32 %v278, %v385
    %v387 = vpop.f32.mrb[0].mxu0
    %388 = vmatprep.mubr.f32.mxu0 0.0
    %389 = vmatmul.mubr.f32.gmra.mrb[0].mxu0 %v251
    %v390 = vpop.f32.mrb[0].mxu0
    %v391 = vadd.f32 %v278, %v390
    %v392 = vpop.f32.mrb[0].mxu0
    %393 = vmatprep.mubr.f32.mxu0 0.0
    %394 = vmatmul.mubr.f32.gmra.mrb[0].mxu0 %v252
    %v395 = vpop.f32.mrb[0].mxu0
    %v396 = vadd.f32 %v278, %v395
    %v397 = vpop.f32.mrb[0].mxu0
    %398 = vmatprep.mubr.f32.mxu0 0.0
    %399 = vmatmul.mubr.f32.gmra.mrb[0].mxu0 %v253
    %v400 = vpop.f32.mrb[0].mxu0
    %v401 = vadd.f32 %v278, %v400
    %v402 = vpop.f32.mrb[0].mxu0
    %403 = vmatprep.mubr.f32.mxu0 0.0
    %404 = vmatmul.mubr.f32.gmra.mrb[0].mxu0 %v254
    %v405 = vpop.f32.mrb[0].mxu0
    %v406 = vadd.f32 %v278, %v405
    %v407 = vpop.f32.mrb[0].mxu0
    %408 = vmatprep.mubr.f32.mxu0 0.0
    %409 = vmatmul.mubr.f32.gmra.mrb[0].mxu0 %v255
    %v410 = vpop.f32.mrb[0].mxu0
    %v411 = vadd.f32 %v278, %v410
    %v412 = vpop.f32.mrb[0].mxu0
    %413 = vmatprep.mubr.f32.mxu0 0.0
    %414 = vmatmul.mubr.f32.gmra.mrb[0].mxu0 %v256
    %v415 = vpop.f32.mrb[0].mxu0
    %v416 = vadd.f32 %v278, %v415
    %v417 = vpop.f32.mrb[0].mxu0
    %418 = vmatprep.mubr.f32.mxu0 0.0
    %419 = vmatmul.mubr.f32.gmra.mrb[0].mxu0 %v257
    %v420 = vpop.f32.mrb[0].mxu0
    %v421 = vadd.f32 %v278, %v420
    %v422 = vpop.f32.mrb[0].mxu0
    %423 = vdwg.mxu0
    %v424 = vmax.f32 %v346, 0.0
    %v425 = vmax.f32 %v351, 0.0
    %v426 = vmax.f32 %v356, 0.0
    %v427 = vmax.f32 %v361, 0.0
    %v428 = vmax.f32 %v366, 0.0
    %v429 = vmax.f32 %v371, 0.0
    %v430 = vmax.f32 %v376, 0.0
    %v431 = vmax.f32 %v381, 0.0
    %v432 = vmax.f32 %v386, 0.0
    %v433 = vmax.f32 %v391, 0.0
    %v434 = vmax.f32 %v396, 0.0
    %v435 = vmax.f32 %v401, 0.0
    %v436 = vmax.f32 %v406, 0.0
    %v437 = vmax.f32 %v411, 0.0
    %v438 = vmax.f32 %v416, 0.0
    %v439 = vmax.f32 %v421, 0.0
    %v440 = vld [vmem:[#allocation2 + $0x98] sm:$0xff]
    %v441 = vld [vmem:[#allocation2 + $0xa0] sm:$0xff]
    %v442 = vld [vmem:[#allocation2 + $0xa8] sm:$0xff]
    %v443 = vld [vmem:[#allocation2 + $0xb0] sm:$0xff]
    %v444 = vld [vmem:[#allocation2 + $0xb8] sm:$0xff]
    %v445 = vld [vmem:[#allocation2 + $0xc0] sm:$0xff]
    %v446 = vld [vmem:[#allocation2 + $0xc8] sm:$0xff]
    %v447 = vld [vmem:[#allocation2 + $0xd0] sm:$0xff]
    %v448 = vld [vmem:[#allocation2 + $0xd8] sm:$0xff]
    %v449 = vld [vmem:[#allocation2 + $0xe0] sm:$0xff]
    %v450 = vld [vmem:[#allocation2 + $0xe8] sm:$0xff]
    %v451 = vld [vmem:[#allocation2 + $0xf0] sm:$0xff]
    %v452 = vld [vmem:[#allocation2 + $0xf8] sm:$0xff]
    %v453 = vld [vmem:[#allocation2 + $0x100] sm:$0xff]
    %v454 = vld [vmem:[#allocation2 + $0x108] sm:$0xff]
    %v455 = vld [vmem:[#allocation2 + $0x110] sm:$0xff]
    %v456 = vld [vmem:[#allocation2 + $0x118] sm:$0x1]
    %v457 = vlaneseq
    %v458 = vshrl.u32 %v457, 7
    %v459 = vsub.s32 0, %v458
    %v460 = vrot.slane %v456, %v459
    %461 = vmatprep.subr.mxu0 0.0
    %462 = vmatpush1.msra.mxu0 %v440
    %463 = vmatprep.subr.mxu0 0.0
    %464 = vmatpush1.msra.mxu0 %v441
    %465 = vmatprep.subr.mxu0 0.0
    %466 = vmatpush1.msra.mxu0 %v442
    %467 = vmatprep.subr.mxu0 0.0
    %468 = vmatpush1.msra.mxu0 %v443
    %469 = vmatprep.subr.mxu0 0.0
    %470 = vmatpush1.msra.mxu0 %v444
    %471 = vmatprep.subr.mxu0 0.0
    %472 = vmatpush1.msra.mxu0 %v445
    %473 = vmatprep.subr.mxu0 0.0
    %474 = vmatpush1.msra.mxu0 %v446
    %475 = vmatprep.subr.mxu0 0.0
    %476 = vmatpush1.msra.mxu0 %v447
    %477 = vmatprep.subr.mxu0 0.0
    %478 = vmatpush1.msra.mxu0 %v448
    %479 = vmatprep.subr.mxu0 0.0
    %480 = vmatpush1.msra.mxu0 %v449
    %481 = vmatprep.subr.mxu0 0.0
    %482 = vmatpush1.msra.mxu0 %v450
    %483 = vmatprep.subr.mxu0 0.0
    %484 = vmatpush1.msra.mxu0 %v451
    %485 = vmatprep.subr.mxu0 0.0
    %486 = vmatpush1.msra.mxu0 %v452
    %487 = vmatprep.subr.mxu0 0.0
    %488 = vmatpush1.msra.mxu0 %v453
    %489 = vmatprep.subr.mxu0 0.0
    %490 = vmatpush1.msra.mxu0 %v454
    %491 = vmatprep.subr.mxu0 0.0
    %492 = vmatpush1.msra.mxu0 %v455
    %493 = vmatprep.subr.mxu0 0.0
    %494 = vmatpush1.msra.mxu0 0.0
    %495 = vmatprep.subr.mxu0 0.0
    %496 = vmatpush1.msra.mxu0 0.0
    %497 = vmatprep.subr.mxu0 0.0
    %498 = vmatpush1.msra.mxu0 0.0
    %499 = vmatprep.subr.mxu0 0.0
    %500 = vmatpush1.msra.mxu0 0.0
    %501 = vmatprep.subr.mxu0 0.0
    %502 = vmatpush1.msra.mxu0 0.0
    %503 = vmatprep.subr.mxu0 0.0
    %504 = vmatpush1.msra.mxu0 0.0
    %505 = vmatprep.subr.mxu0 0.0
    %506 = vmatpush1.msra.mxu0 0.0
    %507 = vmatprep.subr.mxu0 0.0
    %508 = vmatpush1.msra.mxu0 0.0
    %509 = vmatprep.subr.mxu0 0.0
    %510 = vmatpush1.msra.mxu0 0.0
    %511 = vmatprep.subr.mxu0 0.0
    %512 = vmatpush1.msra.mxu0 0.0
    %513 = vmatprep.subr.mxu0 0.0
    %514 = vmatpush1.msra.mxu0 0.0
    %515 = vmatprep.subr.mxu0 0.0
    %516 = vmatpush1.msra.mxu0 0.0
    %517 = vmatprep.subr.mxu0 0.0
    %518 = vmatpush1.msra.mxu0 0.0
    %519 = vmatprep.subr.mxu0 0.0
    %520 = vmatpush1.msra.mxu0 0.0
    %521 = vmatprep.subr.mxu0 0.0
    %522 = vmatpush1.msra.mxu0 0.0
    %523 = vmatprep.subr.mxu0 0.0
    %524 = vmatpush1.msra.mxu0 0.0
    %525 = vmatprep.mubr.f32.mxu0 0.0
    %526 = vmatmul.mubr.f32.gmra.mrb[0].mxu0 %v424
    %v527 = vpop.f32.mrb[0].mxu0
    %v528 = vadd.f32 %v460, %v527
    %v529 = vpop.f32.mrb[0].mxu0
    %530 = vmatprep.mubr.f32.mxu0 0.0
    %531 = vmatmul.mubr.f32.gmra.mrb[0].mxu0 %v425
    %v532 = vpop.f32.mrb[0].mxu0
    %v533 = vadd.f32 %v460, %v532
    %v534 = vpop.f32.mrb[0].mxu0
    %535 = vmatprep.mubr.f32.mxu0 0.0
    %536 = vmatmul.mubr.f32.gmra.mrb[0].mxu0 %v426
    %v537 = vpop.f32.mrb[0].mxu0
    %v538 = vadd.f32 %v460, %v537
    %v539 = vpop.f32.mrb[0].mxu0
    %540 = vmatprep.mubr.f32.mxu0 0.0
    %541 = vmatmul.mubr.f32.gmra.mrb[0].mxu0 %v427
    %v542 = vpop.f32.mrb[0].mxu0
    %v543 = vadd.f32 %v460, %v542
    %v544 = vpop.f32.mrb[0].mxu0
    %545 = vmatprep.mubr.f32.mxu0 0.0
    %546 = vmatmul.mubr.f32.gmra.mrb[0].mxu0 %v428
    %v547 = vpop.f32.mrb[0].mxu0
    %v548 = vadd.f32 %v460, %v547
    %v549 = vpop.f32.mrb[0].mxu0
    %550 = vmatprep.mubr.f32.mxu0 0.0
    %551 = vmatmul.mubr.f32.gmra.mrb[0].mxu0 %v429
    %v552 = vpop.f32.mrb[0].mxu0
    %v553 = vadd.f32 %v460, %v552
    %v554 = vpop.f32.mrb[0].mxu0
    %555 = vmatprep.mubr.f32.mxu0 0.0
    %556 = vmatmul.mubr.f32.gmra.mrb[0].mxu0 %v430
    %v557 = vpop.f32.mrb[0].mxu0
    %v558 = vadd.f32 %v460, %v557
    %v559 = vpop.f32.mrb[0].mxu0
    %560 = vmatprep.mubr.f32.mxu0 0.0
    %561 = vmatmul.mubr.f32.gmra.mrb[0].mxu0 %v431
    %v562 = vpop.f32.mrb[0].mxu0
    %v563 = vadd.f32 %v460, %v562
    %v564 = vpop.f32.mrb[0].mxu0
    %565 = vmatprep.mubr.f32.mxu0 0.0
    %566 = vmatmul.mubr.f32.gmra.mrb[0].mxu0 %v432
    %v567 = vpop.f32.mrb[0].mxu0
    %v568 = vadd.f32 %v460, %v567
    %v569 = vpop.f32.mrb[0].mxu0
    %570 = vmatprep.mubr.f32.mxu0 0.0
    %571 = vmatmul.mubr.f32.gmra.mrb[0].mxu0 %v433
    %v572 = vpop.f32.mrb[0].mxu0
    %v573 = vadd.f32 %v460, %v572
    %v574 = vpop.f32.mrb[0].mxu0
    %575 = vmatprep.mubr.f32.mxu0 0.0
    %576 = vmatmul.mubr.f32.gmra.mrb[0].mxu0 %v434
    %v577 = vpop.f32.mrb[0].mxu0
    %v578 = vadd.f32 %v460, %v577
    %v579 = vpop.f32.mrb[0].mxu0
    %580 = vmatprep.mubr.f32.mxu0 0.0
    %581 = vmatmul.mubr.f32.gmra.mrb[0].mxu0 %v435
    %v582 = vpop.f32.mrb[0].mxu0
    %v583 = vadd.f32 %v460, %v582
    %v584 = vpop.f32.mrb[0].mxu0
    %585 = vmatprep.mubr.f32.mxu0 0.0
    %586 = vmatmul.mubr.f32.gmra.mrb[0].mxu0 %v436
    %v587 = vpop.f32.mrb[0].mxu0
    %v588 = vadd.f32 %v460, %v587
    %v589 = vpop.f32.mrb[0].mxu0
    %590 = vmatprep.mubr.f32.mxu0 0.0
    %591 = vmatmul.mubr.f32.gmra.mrb[0].mxu0 %v437
    %v592 = vpop.f32.mrb[0].mxu0
    %v593 = vadd.f32 %v460, %v592
    %v594 = vpop.f32.mrb[0].mxu0
    %595 = vmatprep.mubr.f32.mxu0 0.0
    %596 = vmatmul.mubr.f32.gmra.mrb[0].mxu0 %v438
    %v597 = vpop.f32.mrb[0].mxu0
    %v598 = vadd.f32 %v460, %v597
    %v599 = vpop.f32.mrb[0].mxu0
    %600 = vmatprep.mubr.f32.mxu0 0.0
    %601 = vmatmul.mubr.f32.gmra.mrb[0].mxu0 %v439
    %v602 = vpop.f32.mrb[0].mxu0
    %v603 = vadd.f32 %v460, %v602
    %v604 = vpop.f32.mrb[0].mxu0
    %605 = vdwg.mxu0
    %v606 = vmax.f32 %v528, 0.0
    %v607 = vmax.f32 %v533, 0.0
    %v608 = vmax.f32 %v538, 0.0
    %v609 = vmax.f32 %v543, 0.0
    %v610 = vmax.f32 %v548, 0.0
    %v611 = vmax.f32 %v553, 0.0
    %v612 = vmax.f32 %v558, 0.0
    %v613 = vmax.f32 %v563, 0.0
    %v614 = vmax.f32 %v568, 0.0
    %v615 = vmax.f32 %v573, 0.0
    %v616 = vmax.f32 %v578, 0.0
    %v617 = vmax.f32 %v583, 0.0
    %v618 = vmax.f32 %v588, 0.0
    %v619 = vmax.f32 %v593, 0.0
    %v620 = vmax.f32 %v598, 0.0
    %v621 = vmax.f32 %v603, 0.0
    %v622 = vld [vmem:[#allocation2 + $0x120] sm:$0xff]
    %v623 = vld [vmem:[#allocation2 + $0x128] sm:$0xff]
    %v624 = vld [vmem:[#allocation2 + $0x130] sm:$0xff]
    %v625 = vld [vmem:[#allocation2 + $0x138] sm:$0xff]
    %v626 = vld [vmem:[#allocation2 + $0x140] sm:$0xff]
    %v627 = vld [vmem:[#allocation2 + $0x148] sm:$0xff]
    %v628 = vld [vmem:[#allocation2 + $0x150] sm:$0xff]
    %v629 = vld [vmem:[#allocation2 + $0x158] sm:$0xff]
    %v630 = vld [vmem:[#allocation2 + $0x160] sm:$0xff]
    %v631 = vld [vmem:[#allocation2 + $0x168] sm:$0xff]
    %v632 = vld [vmem:[#allocation2 + $0x170] sm:$0xff]
    %v633 = vld [vmem:[#allocation2 + $0x178] sm:$0xff]
    %v634 = vld [vmem:[#allocation2 + $0x180] sm:$0xff]
    %v635 = vld [vmem:[#allocation2 + $0x188] sm:$0xff]
    %v636 = vld [vmem:[#allocation2 + $0x190] sm:$0xff]
    %v637 = vld [vmem:[#allocation2 + $0x198] sm:$0xff]
    %v638 = vld [vmem:[#allocation2 + $0x1a0] sm:$0x1]
    %v639 = vlaneseq
    %v640 = vshrl.u32 %v639, 7
    %v641 = vsub.s32 0, %v640
    %v642 = vrot.slane %v638, %v641
    %643 = vmatprep.subr.mxu0 0.0
    %644 = vmatpush1.msra.mxu0 %v622
    %645 = vmatprep.subr.mxu0 0.0
    %646 = vmatpush1.msra.mxu0 %v623
    %647 = vmatprep.subr.mxu0 0.0
    %648 = vmatpush1.msra.mxu0 %v624
    %649 = vmatprep.subr.mxu0 0.0
    %650 = vmatpush1.msra.mxu0 %v625
    %651 = vmatprep.subr.mxu0 0.0
    %652 = vmatpush1.msra.mxu0 %v626
    %653 = vmatprep.subr.mxu0 0.0
    %654 = vmatpush1.msra.mxu0 %v627
    %655 = vmatprep.subr.mxu0 0.0
    %656 = vmatpush1.msra.mxu0 %v628
    %657 = vmatprep.subr.mxu0 0.0
    %658 = vmatpush1.msra.mxu0 %v629
    %659 = vmatprep.subr.mxu0 0.0
    %660 = vmatpush1.msra.mxu0 %v630
    %661 = vmatprep.subr.mxu0 0.0
    %662 = vmatpush1.msra.mxu0 %v631
    %663 = vmatprep.subr.mxu0 0.0
    %664 = vmatpush1.msra.mxu0 %v632
    %665 = vmatprep.subr.mxu0 0.0
    %666 = vmatpush1.msra.mxu0 %v633
    %667 = vmatprep.subr.mxu0 0.0
    %668 = vmatpush1.msra.mxu0 %v634
    %669 = vmatprep.subr.mxu0 0.0
    %670 = vmatpush1.msra.mxu0 %v635
    %671 = vmatprep.subr.mxu0 0.0
    %672 = vmatpush1.msra.mxu0 %v636
    %673 = vmatprep.subr.mxu0 0.0
    %674 = vmatpush1.msra.mxu0 %v637
    %675 = vmatprep.subr.mxu0 0.0
    %676 = vmatpush1.msra.mxu0 0.0
    %677 = vmatprep.subr.mxu0 0.0
    %678 = vmatpush1.msra.mxu0 0.0
    %679 = vmatprep.subr.mxu0 0.0
    %680 = vmatpush1.msra.mxu0 0.0
    %681 = vmatprep.subr.mxu0 0.0
    %682 = vmatpush1.msra.mxu0 0.0
    %683 = vmatprep.subr.mxu0 0.0
    %684 = vmatpush1.msra.mxu0 0.0
    %685 = vmatprep.subr.mxu0 0.0
    %686 = vmatpush1.msra.mxu0 0.0
    %687 = vmatprep.subr.mxu0 0.0
    %688 = vmatpush1.msra.mxu0 0.0
    %689 = vmatprep.subr.mxu0 0.0
    %690 = vmatpush1.msra.mxu0 0.0
    %691 = vmatprep.subr.mxu0 0.0
    %692 = vmatpush1.msra.mxu0 0.0
    %693 = vmatprep.subr.mxu0 0.0
    %694 = vmatpush1.msra.mxu0 0.0
    %695 = vmatprep.subr.mxu0 0.0
    %696 = vmatpush1.msra.mxu0 0.0
    %697 = vmatprep.subr.mxu0 0.0
    %698 = vmatpush1.msra.mxu0 0.0
    %699 = vmatprep.subr.mxu0 0.0
    %700 = vmatpush1.msra.mxu0 0.0
    %701 = vmatprep.subr.mxu0 0.0
    %702 = vmatpush1.msra.mxu0 0.0
    %703 = vmatprep.subr.mxu0 0.0
    %704 = vmatpush1.msra.mxu0 0.0
    %705 = vmatprep.subr.mxu0 0.0
    %706 = vmatpush1.msra.mxu0 0.0
    %707 = vmatprep.mubr.f32.mxu0 0.0
    %708 = vmatmul.mubr.f32.gmra.mrb[0].mxu0 %v606
    %v709 = vpop.f32.mrb[0].mxu0
    %v710 = vadd.f32 %v642, %v709
    %v711 = vpop.f32.mrb[0].mxu0
    %712 = vmatprep.mubr.f32.mxu0 0.0
    %713 = vmatmul.mubr.f32.gmra.mrb[0].mxu0 %v607
    %v714 = vpop.f32.mrb[0].mxu0
    %v715 = vadd.f32 %v642, %v714
    %v716 = vpop.f32.mrb[0].mxu0
    %717 = vmatprep.mubr.f32.mxu0 0.0
    %718 = vmatmul.mubr.f32.gmra.mrb[0].mxu0 %v608
    %v719 = vpop.f32.mrb[0].mxu0
    %v720 = vadd.f32 %v642, %v719
    %v721 = vpop.f32.mrb[0].mxu0
    %722 = vmatprep.mubr.f32.mxu0 0.0
    %723 = vmatmul.mubr.f32.gmra.mrb[0].mxu0 %v609
    %v724 = vpop.f32.mrb[0].mxu0
    %v725 = vadd.f32 %v642, %v724
    %v726 = vpop.f32.mrb[0].mxu0
    %727 = vmatprep.mubr.f32.mxu0 0.0
    %728 = vmatmul.mubr.f32.gmra.mrb[0].mxu0 %v610
    %v729 = vpop.f32.mrb[0].mxu0
    %v730 = vadd.f32 %v642, %v729
    %v731 = vpop.f32.mrb[0].mxu0
    %732 = vmatprep.mubr.f32.mxu0 0.0
    %733 = vmatmul.mubr.f32.gmra.mrb[0].mxu0 %v611
    %v734 = vpop.f32.mrb[0].mxu0
    %v735 = vadd.f32 %v642, %v734
    %v736 = vpop.f32.mrb[0].mxu0
    %737 = vmatprep.mubr.f32.mxu0 0.0
    %738 = vmatmul.mubr.f32.gmra.mrb[0].mxu0 %v612
    %v739 = vpop.f32.mrb[0].mxu0
    %v740 = vadd.f32 %v642, %v739
    %v741 = vpop.f32.mrb[0].mxu0
    %742 = vmatprep.mubr.f32.mxu0 0.0
    %743 = vmatmul.mubr.f32.gmra.mrb[0].mxu0 %v613
    %v744 = vpop.f32.mrb[0].mxu0
    %v745 = vadd.f32 %v642, %v744
    %v746 = vpop.f32.mrb[0].mxu0
    %747 = vmatprep.mubr.f32.mxu0 0.0
    %748 = vmatmul.mubr.f32.gmra.mrb[0].mxu0 %v614
    %v749 = vpop.f32.mrb[0].mxu0
    %v750 = vadd.f32 %v642, %v749
    %v751 = vpop.f32.mrb[0].mxu0
    %752 = vmatprep.mubr.f32.mxu0 0.0
    %753 = vmatmul.mubr.f32.gmra.mrb[0].mxu0 %v615
    %v754 = vpop.f32.mrb[0].mxu0
    %v755 = vadd.f32 %v642, %v754
    %v756 = vpop.f32.mrb[0].mxu0
    %757 = vmatprep.mubr.f32.mxu0 0.0
    %758 = vmatmul.mubr.f32.gmra.mrb[0].mxu0 %v616
    %v759 = vpop.f32.mrb[0].mxu0
    %v760 = vadd.f32 %v642, %v759
    %v761 = vpop.f32.mrb[0].mxu0
    %762 = vmatprep.mubr.f32.mxu0 0.0
    %763 = vmatmul.mubr.f32.gmra.mrb[0].mxu0 %v617
    %v764 = vpop.f32.mrb[0].mxu0
    %v765 = vadd.f32 %v642, %v764
    %v766 = vpop.f32.mrb[0].mxu0
    %767 = vmatprep.mubr.f32.mxu0 0.0
    %768 = vmatmul.mubr.f32.gmra.mrb[0].mxu0 %v618
    %v769 = vpop.f32.mrb[0].mxu0
    %v770 = vadd.f32 %v642, %v769
    %v771 = vpop.f32.mrb[0].mxu0
    %772 = vmatprep.mubr.f32.mxu0 0.0
    %773 = vmatmul.mubr.f32.gmra.mrb[0].mxu0 %v619
    %v774 = vpop.f32.mrb[0].mxu0
    %v775 = vadd.f32 %v642, %v774
    %v776 = vpop.f32.mrb[0].mxu0
    %777 = vmatprep.mubr.f32.mxu0 0.0
    %778 = vmatmul.mubr.f32.gmra.mrb[0].mxu0 %v620
    %v779 = vpop.f32.mrb[0].mxu0
    %v780 = vadd.f32 %v642, %v779
    %v781 = vpop.f32.mrb[0].mxu0
    %782 = vmatprep.mubr.f32.mxu0 0.0
    %783 = vmatmul.mubr.f32.gmra.mrb[0].mxu0 %v621
    %v784 = vpop.f32.mrb[0].mxu0
    %v785 = vadd.f32 %v642, %v784
    %v786 = vpop.f32.mrb[0].mxu0
    %787 = vdwg.mxu0
    %788 = vmax.xlane.f32.xlu0 %v710
    %v789 = vpop.xlane.xlu0 %788
    %790 = vmax.xlane.f32.xlu0 %v715
    %v791 = vpop.xlane.xlu0 %790
    %792 = vmax.xlane.f32.xlu0 %v720
    %v793 = vpop.xlane.xlu0 %792
    %794 = vmax.xlane.f32.xlu0 %v725
    %v795 = vpop.xlane.xlu0 %794
    %796 = vmax.xlane.f32.xlu0 %v730
    %v797 = vpop.xlane.xlu0 %796
    %798 = vmax.xlane.f32.xlu0 %v735
    %v799 = vpop.xlane.xlu0 %798
    %800 = vmax.xlane.f32.xlu0 %v740
    %v801 = vpop.xlane.xlu0 %800
    %802 = vmax.xlane.f32.xlu0 %v745
    %v803 = vpop.xlane.xlu0 %802
    %804 = vmax.xlane.f32.xlu0 %v750
    %v805 = vpop.xlane.xlu0 %804
    %806 = vmax.xlane.f32.xlu0 %v755
    %v807 = vpop.xlane.xlu0 %806
    %808 = vmax.xlane.f32.xlu0 %v760
    %v809 = vpop.xlane.xlu0 %808
    %810 = vmax.xlane.f32.xlu0 %v765
    %v811 = vpop.xlane.xlu0 %810
    %812 = vmax.xlane.f32.xlu0 %v770
    %v813 = vpop.xlane.xlu0 %812
    %814 = vmax.xlane.f32.xlu0 %v775
    %v815 = vpop.xlane.xlu0 %814
    %816 = vmax.xlane.f32.xlu0 %v780
    %v817 = vpop.xlane.xlu0 %816
    %818 = vmax.xlane.f32.xlu0 %v785
    %v819 = vpop.xlane.xlu0 %818
    %v820 = vsub.f32 %v710, %v789
    %v821 = vsub.f32 %v715, %v791
    %v822 = vsub.f32 %v720, %v793
    %v823 = vsub.f32 %v725, %v795
    %v824 = vsub.f32 %v730, %v797
    %v825 = vsub.f32 %v735, %v799
    %v826 = vsub.f32 %v740, %v801
    %v827 = vsub.f32 %v745, %v803
    %v828 = vsub.f32 %v750, %v805
    %v829 = vsub.f32 %v755, %v807
    %v830 = vsub.f32 %v760, %v809
    %v831 = vsub.f32 %v765, %v811
    %v832 = vsub.f32 %v770, %v813
    %v833 = vsub.f32 %v775, %v815
    %v834 = vsub.f32 %v780, %v817
    %v835 = vsub.f32 %v785, %v819
    %v836 = vmul.f32 %v820, 1.442695
    %v837 = vpow.pop %v836
    %v838 = vmul.f32 %v821, 1.442695
    %v839 = vpow.pop %v838
    %v840 = vmul.f32 %v822, 1.442695
    %v841 = vpow.pop %v840
    %v842 = vmul.f32 %v823, 1.442695
    %v843 = vpow.pop %v842
    %v844 = vmul.f32 %v824, 1.442695
    %v845 = vpow.pop %v844
    %v846 = vmul.f32 %v825, 1.442695
    %v847 = vpow.pop %v846
    %v848 = vmul.f32 %v826, 1.442695
    %v849 = vpow.pop %v848
    %v850 = vmul.f32 %v827, 1.442695
    %v851 = vpow.pop %v850
    %v852 = vmul.f32 %v828, 1.442695
    %v853 = vpow.pop %v852
    %v854 = vmul.f32 %v829, 1.442695
    %v855 = vpow.pop %v854
    %v856 = vmul.f32 %v830, 1.442695
    %v857 = vpow.pop %v856
    %v858 = vmul.f32 %v831, 1.442695
    %v859 = vpow.pop %v858
    %v860 = vmul.f32 %v832, 1.442695
    %v861 = vpow.pop %v860
    %v862 = vmul.f32 %v833, 1.442695
    %v863 = vpow.pop %v862
    %v864 = vmul.f32 %v834, 1.442695
    %v865 = vpow.pop %v864
    %v866 = vmul.f32 %v835, 1.442695
    %v867 = vpow.pop %v866
    %868 = vadd.xlane.f32.xlu0 %v837
    %v869 = vpop.xlane.xlu0 %868
    %870 = vadd.xlane.f32.xlu0 %v839
    %v871 = vpop.xlane.xlu0 %870
    %872 = vadd.xlane.f32.xlu0 %v841
    %v873 = vpop.xlane.xlu0 %872
    %874 = vadd.xlane.f32.xlu0 %v843
    %v875 = vpop.xlane.xlu0 %874
    %876 = vadd.xlane.f32.xlu0 %v845
    %v877 = vpop.xlane.xlu0 %876
    %878 = vadd.xlane.f32.xlu0 %v847
    %v879 = vpop.xlane.xlu0 %878
    %880 = vadd.xlane.f32.xlu0 %v849
    %v881 = vpop.xlane.xlu0 %880
    %882 = vadd.xlane.f32.xlu0 %v851
    %v883 = vpop.xlane.xlu0 %882
    %884 = vadd.xlane.f32.xlu0 %v853
    %v885 = vpop.xlane.xlu0 %884
    %886 = vadd.xlane.f32.xlu0 %v855
    %v887 = vpop.xlane.xlu0 %886
    %888 = vadd.xlane.f32.xlu0 %v857
    %v889 = vpop.xlane.xlu0 %888
    %890 = vadd.xlane.f32.xlu0 %v859
    %v891 = vpop.xlane.xlu0 %890
    %892 = vadd.xlane.f32.xlu0 %v861
    %v893 = vpop.xlane.xlu0 %892
    %894 = vadd.xlane.f32.xlu0 %v863
    %v895 = vpop.xlane.xlu0 %894
    %896 = vadd.xlane.f32.xlu0 %v865
    %v897 = vpop.xlane.xlu0 %896
    %898 = vadd.xlane.f32.xlu0 %v867
    %v899 = vpop.xlane.xlu0 %898
    %v900 = vrcp.pop %v869
    %v901 = vrcp.pop %v871
    %v902 = vrcp.pop %v873
    %v903 = vrcp.pop %v875
    %v904 = vrcp.pop %v877
    %v905 = vrcp.pop %v879
    %v906 = vrcp.pop %v881
    %v907 = vrcp.pop %v883
    %v908 = vrcp.pop %v885
    %v909 = vrcp.pop %v887
    %v910 = vrcp.pop %v889
    %v911 = vrcp.pop %v891
    %v912 = vrcp.pop %v893
    %v913 = vrcp.pop %v895
    %v914 = vrcp.pop %v897
    %v915 = vrcp.pop %v899
    %v916 = vmul.f32 %v837, %v900
    %v917 = vmul.f32 %v839, %v901
    %v918 = vmul.f32 %v841, %v902
    %v919 = vmul.f32 %v843, %v903
    %v920 = vmul.f32 %v845, %v904
    %v921 = vmul.f32 %v847, %v905
    %v922 = vmul.f32 %v849, %v906
    %v923 = vmul.f32 %v851, %v907
    %v924 = vmul.f32 %v853, %v908
    %v925 = vmul.f32 %v855, %v909
    %v926 = vmul.f32 %v857, %v910
    %v927 = vmul.f32 %v859, %v911
    %v928 = vmul.f32 %v861, %v912
    %v929 = vmul.f32 %v863, %v913
    %v930 = vmul.f32 %v865, %v914
    %v931 = vmul.f32 %v867, %v915
    %932 = vxpose.xlu0.b32.start [1/16] %v916, 128
    %933 = vxpose.xlu0.b32.cont [2/16] %v917, 128
    %934 = vxpose.xlu0.b32.cont [3/16] %v918, 128
    %935 = vxpose.xlu0.b32.cont [4/16] %v919, 128
    %936 = vxpose.xlu0.b32.cont [5/16] %v920, 128
    %937 = vxpose.xlu0.b32.cont [6/16] %v921, 128
    %938 = vxpose.xlu0.b32.cont [7/16] %v922, 128
    %939 = vxpose.xlu0.b32.cont [8/16] %v923, 128
    %940 = vxpose.xlu0.b32.cont [9/16] %v924, 128
    %941 = vxpose.xlu0.b32.cont [10/16] %v925, 128
    %942 = vxpose.xlu0.b32.cont [11/16] %v926, 128
    %943 = vxpose.xlu0.b32.cont [12/16] %v927, 128
    %944 = vxpose.xlu0.b32.cont [13/16] %v928, 128
    %945 = vxpose.xlu0.b32.cont [14/16] %v929, 128
    %946 = vxpose.xlu0.b32.cont [15/16] %v930, 128
    %947 = vxpose.xlu0.b32.end [16/16] %v931, 128
    %v948 = vpop.trf.xlu0
    %v949 = vpop.trf.xlu0
    %v950 = vpop.trf.xlu0
    %v951 = vpop.trf.xlu0
    %v952 = vpop.trf.xlu0
    %v953 = vpop.trf.xlu0
    %v954 = vpop.trf.xlu0
    %v955 = vpop.trf.xlu0
    %v956 = vpop.trf.xlu0
    %v957 = vpop.trf.xlu0
    %v958 = vpop.trf.xlu0
    %v959 = vpop.trf.xlu0
    %v960 = vpop.trf.xlu0
    %v961 = vpop.trf.xlu0
    %v962 = vpop.trf.xlu0
    %v963 = vpop.trf.xlu0
    %964 = vst [vmem:[#allocation5] sm:$0xff] %v948
    // Predicated region
    $region14: #{tpu_custom_call.1} parent=1 // pred_check
      _
    $region15: #{tpu_custom_call.1} parent=1 // pred_check_branch
      %966 = sbr.rel (0) target = $region17
    $region16: #{tpu_custom_call.1} parent=1 // pred_region
      %s968 = ssub.s32 128, 128
      %969 = vsyncadd [#allocation4], %s968
      %s971 = sshll.u32 [#allocation5], 4
      %s972 = int_to_ptr.vmem [resolvable:$true] %s971
      %974 = dma.vmem_to_hbm [thread:$0]  %s972, 128, %s2, [#allocation4]
    $region17: #{tpu_custom_call.1} parent=1 // pred_fallthru
      _
    // Predicated region
    $region18: #{tpu_custom_call.1} parent=1 // pred_check
      _
    $region19: #{tpu_custom_call.1} parent=1 // pred_check_branch
      %976 = sbr.rel (0) target = $region21
    $region20: #{tpu_custom_call.1} parent=1 // pred_region
      %977 = dma.done [#allocation4], 128
    $region21: #{tpu_custom_call.1} parent=1 // pred_fallthru
      _
    %978 = vsyncpa [#allocation3], 1
    %979 = vsyncpa [#allocation4], 1

// kernel: tpu_custom_call.1
$region0: #{tpu_custom_call.1}
  #allocation0 [shape = 'u32[]', space=smem, size = 0x4, offset = 0x4, fixed_abs, tag = 'smem constant byte address 0x4 - core index']
  #allocation1 [shape = 'u32[144,128]{1,0:T(1,128)}', space=vmem, size = 0x12000, scoped, tag = 'internal scratch']
  %s0 = inlined_call_operand.vmem [shape: f32[128,8], index: 0, kind: input, shape index: {}]
  %s1 = inlined_call_operand.hbm [shape: f32[424,128], index: 1, kind: input, shape index: {}]
  %s2 = inlined_call_operand.hbm [shape: f32[8,128], index: 2, kind: output, shape index: {}]
  %s3 = sld [smem:[#allocation0]]
  $region22: #{tpu_custom_call.1} parent=0
    _
  %s5 = ssub.s32 1, %s3
  %s6 = scalar_select 0, %s5, %s3
  $region1: #{tpu_custom_call.1} parent=0
    #allocation2 [shape = 'u8[217088]{0}', space=vmem, size = 0x35000, scoped, tag = 'input window, operand 1, single buffered']
    #allocation3 [shape = 's32[1]{0}', space=sflag, size = 0x4, scoped, tag = 'scoped memory for tpu_custom_call.1']
    #allocation4 [shape = 's32[1]{0}', space=sflag, size = 0x4, scoped, tag = 'scoped memory for tpu_custom_call.1']
    #allocation5 [shape = 'u8[4096]{0}', space=vmem, size = 0x1000, scoped, tag = 'output window, operand 0, single buffered']
    %7 = vsyncpa [#allocation3], 0
    %8 = vsyncpa [#allocation4], 0
    // Predicated region
    $region2: #{tpu_custom_call.1} parent=1 // pred_check
      _
    $region3: #{tpu_custom_call.1} parent=1 // pred_check_branch
      %10 = sbr.rel (0) target = $region5
    $region4: #{tpu_custom_call.1} parent=1 // pred_region
      _
    $region5: #{tpu_custom_call.1} parent=1 // pred_fallthru
      _
    // Predicated region
    $region6: #{tpu_custom_call.1} parent=1 // pred_check
      _
    $region7: #{tpu_custom_call.1} parent=1 // pred_check_branch
      %12 = sbr.rel (0) target = $region9
    $region8: #{tpu_custom_call.1} parent=1 // pred_region
      %s14 = ssub.s32 6784, 6784
      %15 = vsyncadd [#allocation3], %s14
      %s16 = sshll.u32 [#allocation2], 4
      %s17 = int_to_ptr.vmem [resolvable:$true] %s16
      %22 = dma.hbm_to_vmem [thread:$0]  %s1, 6784, %s17, [#allocation3], 128, 128, 8
    $region9: #{tpu_custom_call.1} parent=1 // pred_fallthru
      _
    // Predicated region
    $region10: #{tpu_custom_call.1} parent=1 // pred_check
      _
    $region11: #{tpu_custom_call.1} parent=1 // pred_check_branch
      %24 = sbr.rel (0) target = $region13
    $region12: #{tpu_custom_call.1} parent=1 // pred_region
      %25 = dma.done [#allocation3], 6784
    $region13: #{tpu_custom_call.1} parent=1 // pred_fallthru
      _
    %v26 = vld [vmem:[%s0] sm:$0xff]
    %v27 = vld [vmem:[%s0 + $0x8] sm:$0xff]
    %v28 = vld [vmem:[%s0 + $0x10] sm:$0xff]
    %v29 = vld [vmem:[%s0 + $0x18] sm:$0xff]
    %v30 = vld [vmem:[%s0 + $0x20] sm:$0xff]
    %v31 = vld [vmem:[%s0 + $0x28] sm:$0xff]
    %v32 = vld [vmem:[%s0 + $0x30] sm:$0xff]
    %v33 = vld [vmem:[%s0 + $0x38] sm:$0xff]
    %v34 = vld [vmem:[%s0 + $0x40] sm:$0xff]
    %v35 = vld [vmem:[%s0 + $0x48] sm:$0xff]
    %v36 = vld [vmem:[%s0 + $0x50] sm:$0xff]
    %v37 = vld [vmem:[%s0 + $0x58] sm:$0xff]
    %v38 = vld [vmem:[%s0 + $0x60] sm:$0xff]
    %v39 = vld [vmem:[%s0 + $0x68] sm:$0xff]
    %v40 = vld [vmem:[%s0 + $0x70] sm:$0xff]
    %v41 = vld [vmem:[%s0 + $0x78] sm:$0xff]
    %v42 = vld [vmem:[#allocation2] sm:$0xff]
    %v43 = vld [vmem:[#allocation2 + $0x8] sm:$0x1]
    %v44 = vlaneseq
    %v45 = vshrl.u32 %v44, 7
    %v46 = vsub.s32 0, %v45
    %v47 = vrot.slane %v43, %v46
    %vm48 = vcmask 64512
    %v50 = vsel %vm48, %v26, 0
    %v53 = vsel %vm48, %v27, 0
    %v56 = vsel %vm48, %v28, 0
    %v59 = vsel %vm48, %v29, 0
    %v62 = vsel %vm48, %v30, 0
    %v65 = vsel %vm48, %v31, 0
    %v68 = vsel %vm48, %v32, 0
    %v71 = vsel %vm48, %v33, 0
    %v74 = vsel %vm48, %v34, 0
    %v77 = vsel %vm48, %v35, 0
    %v80 = vsel %vm48, %v36, 0
    %v83 = vsel %vm48, %v37, 0
    %v86 = vsel %vm48, %v38, 0
    %v89 = vsel %vm48, %v39, 0
    %v92 = vsel %vm48, %v40, 0
    %v95 = vsel %vm48, %v41, 0
    %97 = vmatprep.subr.mxu0 0.0
    %98 = vmatpush1.msra.mxu0 %v42
    %99 = vmatprep.subr.mxu0 0.0
    %100 = vmatpush1.msra.mxu0 0.0
    %101 = vmatprep.subr.mxu0 0.0
    %102 = vmatpush1.msra.mxu0 0.0
    %103 = vmatprep.subr.mxu0 0.0
    %104 = vmatpush1.msra.mxu0 0.0
    %105 = vmatprep.subr.mxu0 0.0
    %106 = vmatpush1.msra.mxu0 0.0
    %107 = vmatprep.subr.mxu0 0.0
    %108 = vmatpush1.msra.mxu0 0.0
    %109 = vmatprep.subr.mxu0 0.0
    %110 = vmatpush1.msra.mxu0 0.0
    %111 = vmatprep.subr.mxu0 0.0
    %112 = vmatpush1.msra.mxu0 0.0
    %113 = vmatprep.subr.mxu0 0.0
    %114 = vmatpush1.msra.mxu0 0.0
    %115 = vmatprep.subr.mxu0 0.0
    %116 = vmatpush1.msra.mxu0 0.0
    %117 = vmatprep.subr.mxu0 0.0
    %118 = vmatpush1.msra.mxu0 0.0
    %119 = vmatprep.subr.mxu0 0.0
    %120 = vmatpush1.msra.mxu0 0.0
    %121 = vmatprep.subr.mxu0 0.0
    %122 = vmatpush1.msra.mxu0 0.0
    %123 = vmatprep.subr.mxu0 0.0
    %124 = vmatpush1.msra.mxu0 0.0
    %125 = vmatprep.subr.mxu0 0.0
    %126 = vmatpush1.msra.mxu0 0.0
    %127 = vmatprep.subr.mxu0 0.0
    %128 = vmatpush1.msra.mxu0 0.0
    %129 = vmatprep.subr.mxu0 0.0
    %130 = vmatpush1.msra.mxu0 0.0
    %131 = vmatprep.subr.mxu0 0.0
    %132 = vmatpush1.msra.mxu0 0.0
    %133 = vmatprep.subr.mxu0 0.0
    %134 = vmatpush1.msra.mxu0 0.0
    %135 = vmatprep.subr.mxu0 0.0
    %136 = vmatpush1.msra.mxu0 0.0
    %137 = vmatprep.subr.mxu0 0.0
    %138 = vmatpush1.msra.mxu0 0.0
    %139 = vmatprep.subr.mxu0 0.0
    %140 = vmatpush1.msra.mxu0 0.0
    %141 = vmatprep.subr.mxu0 0.0
    %142 = vmatpush1.msra.mxu0 0.0
    %143 = vmatprep.subr.mxu0 0.0
    %144 = vmatpush1.msra.mxu0 0.0
    %145 = vmatprep.subr.mxu0 0.0
    %146 = vmatpush1.msra.mxu0 0.0
    %147 = vmatprep.subr.mxu0 0.0
    %148 = vmatpush1.msra.mxu0 0.0
    %149 = vmatprep.subr.mxu0 0.0
    %150 = vmatpush1.msra.mxu0 0.0
    %151 = vmatprep.subr.mxu0 0.0
    %152 = vmatpush1.msra.mxu0 0.0
    %153 = vmatprep.subr.mxu0 0.0
    %154 = vmatpush1.msra.mxu0 0.0
    %155 = vmatprep.subr.mxu0 0.0
    %156 = vmatpush1.msra.mxu0 0.0
    %157 = vmatprep.subr.mxu0 0.0
    %158 = vmatpush1.msra.mxu0 0.0
    %159 = vmatprep.subr.mxu0 0.0
    %160 = vmatpush1.msra.mxu0 0.0
    %161 = vmatprep.mubr.f32.mxu0 0.0
    %162 = vmatmul.mubr.f32.gmra.mrb[0].mxu0 %v50
    %v163 = vpop.f32.mrb[0].mxu0
    %v164 = vadd.f32 %v47, %v163
    %v165 = vpop.f32.mrb[0].mxu0
    %166 = vmatprep.mubr.f32.mxu0 0.0
    %167 = vmatmul.mubr.f32.gmra.mrb[0].mxu0 %v53
    %v168 = vpop.f32.mrb[0].mxu0
    %v169 = vadd.f32 %v47, %v168
    %v170 = vpop.f32.mrb[0].mxu0
    %171 = vmatprep.mubr.f32.mxu0 0.0
    %172 = vmatmul.mubr.f32.gmra.mrb[0].mxu0 %v56
    %v173 = vpop.f32.mrb[0].mxu0
    %v174 = vadd.f32 %v47, %v173
    %v175 = vpop.f32.mrb[0].mxu0
    %176 = vmatprep.mubr.f32.mxu0 0.0
    %177 = vmatmul.mubr.f32.gmra.mrb[0].mxu0 %v59
    %v178 = vpop.f32.mrb[0].mxu0
    %v179 = vadd.f32 %v47, %v178
    %v180 = vpop.f32.mrb[0].mxu0
    %181 = vmatprep.mubr.f32.mxu0 0.0
    %182 = vmatmul.mubr.f32.gmra.mrb[0].mxu0 %v62
    %v183 = vpop.f32.mrb[0].mxu0
    %v184 = vadd.f32 %v47, %v183
    %v185 = vpop.f32.mrb[0].mxu0
    %186 = vmatprep.mubr.f32.mxu0 0.0
    %187 = vmatmul.mubr.f32.gmra.mrb[0].mxu0 %v65
    %v188 = vpop.f32.mrb[0].mxu0
    %v189 = vadd.f32 %v47, %v188
    %v190 = vpop.f32.mrb[0].mxu0
    %191 = vmatprep.mubr.f32.mxu0 0.0
    %192 = vmatmul.mubr.f32.gmra.mrb[0].mxu0 %v68
    %v193 = vpop.f32.mrb[0].mxu0
    %v194 = vadd.f32 %v47, %v193
    %v195 = vpop.f32.mrb[0].mxu0
    %196 = vmatprep.mubr.f32.mxu0 0.0
    %197 = vmatmul.mubr.f32.gmra.mrb[0].mxu0 %v71
    %v198 = vpop.f32.mrb[0].mxu0
    %v199 = vadd.f32 %v47, %v198
    %v200 = vpop.f32.mrb[0].mxu0
    %201 = vmatprep.mubr.f32.mxu0 0.0
    %202 = vmatmul.mubr.f32.gmra.mrb[0].mxu0 %v74
    %v203 = vpop.f32.mrb[0].mxu0
    %v204 = vadd.f32 %v47, %v203
    %v205 = vpop.f32.mrb[0].mxu0
    %206 = vmatprep.mubr.f32.mxu0 0.0
    %207 = vmatmul.mubr.f32.gmra.mrb[0].mxu0 %v77
    %v208 = vpop.f32.mrb[0].mxu0
    %v209 = vadd.f32 %v47, %v208
    %v210 = vpop.f32.mrb[0].mxu0
    %211 = vmatprep.mubr.f32.mxu0 0.0
    %212 = vmatmul.mubr.f32.gmra.mrb[0].mxu0 %v80
    %v213 = vpop.f32.mrb[0].mxu0
    %v214 = vadd.f32 %v47, %v213
    %v215 = vpop.f32.mrb[0].mxu0
    %216 = vmatprep.mubr.f32.mxu0 0.0
    %217 = vmatmul.mubr.f32.gmra.mrb[0].mxu0 %v83
    %v218 = vpop.f32.mrb[0].mxu0
    %v219 = vadd.f32 %v47, %v218
    %v220 = vpop.f32.mrb[0].mxu0
    %221 = vmatprep.mubr.f32.mxu0 0.0
    %222 = vmatmul.mubr.f32.gmra.mrb[0].mxu0 %v86
    %v223 = vpop.f32.mrb[0].mxu0
    %v224 = vadd.f32 %v47, %v223
    %v225 = vpop.f32.mrb[0].mxu0
    %226 = vmatprep.mubr.f32.mxu0 0.0
    %227 = vmatmul.mubr.f32.gmra.mrb[0].mxu0 %v89
    %v228 = vpop.f32.mrb[0].mxu0
    %v229 = vadd.f32 %v47, %v228
    %v230 = vpop.f32.mrb[0].mxu0
    %231 = vmatprep.mubr.f32.mxu0 0.0
    %232 = vmatmul.mubr.f32.gmra.mrb[0].mxu0 %v92
    %v233 = vpop.f32.mrb[0].mxu0
    %v234 = vadd.f32 %v47, %v233
    %v235 = vpop.f32.mrb[0].mxu0
    %236 = vmatprep.mubr.f32.mxu0 0.0
    %237 = vmatmul.mubr.f32.gmra.mrb[0].mxu0 %v95
    %v238 = vpop.f32.mrb[0].mxu0
    %v239 = vadd.f32 %v47, %v238
    %v240 = vpop.f32.mrb[0].mxu0
    %241 = vdwg.mxu0
    %v242 = vmax.f32 %v164, 0.0
    %v243 = vmax.f32 %v169, 0.0
    %v244 = vmax.f32 %v174, 0.0
    %v245 = vmax.f32 %v179, 0.0
    %v246 = vmax.f32 %v184, 0.0
    %v247 = vmax.f32 %v189, 0.0
    %v248 = vmax.f32 %v194, 0.0
    %v249 = vmax.f32 %v199, 0.0
    %v250 = vmax.f32 %v204, 0.0
    %v251 = vmax.f32 %v209, 0.0
    %v252 = vmax.f32 %v214, 0.0
    %v253 = vmax.f32 %v219, 0.0
    %v254 = vmax.f32 %v224, 0.0
    %v255 = vmax.f32 %v229, 0.0
    %v256 = vmax.f32 %v234, 0.0
    %v257 = vmax.f32 %v239, 0.0
    %v258 = vld [vmem:[#allocation2 + $0x10] sm:$0xff]
    %v259 = vld [vmem:[#allocation2 + $0x18] sm:$0xff]
    %v260 = vld [vmem:[#allocation2 + $0x20] sm:$0xff]
    %v261 = vld [vmem:[#allocation2 + $0x28] sm:$0xff]
    %v262 = vld [vmem:[#allocation2 + $0x30] sm:$0xff]
    %v263 = vld [vmem:[#allocation2 + $0x38] sm:$0xff]
    %v264 = vld [vmem:[#allocation2 + $0x40] sm:$0xff]
    %v265 = vld [vmem:[#allocation2 + $0x48] sm:$0xff]
    %v266 = vld [vmem:[#allocation2 + $0x50] sm:$0xff]
    %v267 = vld [vmem:[#allocation2 + $0x58] sm:$0xff]
    %v268 = vld [vmem:[#allocation2 + $0x60] sm:$0xff]
    %v269 = vld [vmem:[#allocation2 + $0x68] sm:$0xff]
    %v270 = vld [vmem:[#allocation2 + $0x70] sm:$0xff]
    %v271 = vld [vmem:[#allocation2 + $0x78] sm:$0xff]
    %v272 = vld [vmem:[#allocation2 + $0x80] sm:$0xff]
    %v273 = vld [vmem:[#allocation2 + $0x88] sm:$0xff]
    %v274 = vld [vmem:[#allocation2 + $0x90] sm:$0x1]
    %v275 = vlaneseq
    %v276 = vshrl.u32 %v275, 7
    %v277 = vsub.s32 0, %v276
    %v278 = vrot.slane %v274, %v277
    %279 = vmatprep.subr.mxu0 0.0
    %280 = vmatpush1.msra.mxu0 %v258
    %281 = vmatprep.subr.mxu0 0.0
    %282 = vmatpush1.msra.mxu0 %v259
    %283 = vmatprep.subr.mxu0 0.0
    %284 = vmatpush1.msra.mxu0 %v260
    %285 = vmatprep.subr.mxu0 0.0
    %286 = vmatpush1.msra.mxu0 %v261
    %287 = vmatprep.subr.mxu0 0.0
    %288 = vmatpush1.msra.mxu0 %v262
    %289 = vmatprep.subr.mxu0 0.0
    %290 = vmatpush1.msra.mxu0 %v263
    %291 = vmatprep.subr.mxu0 0.0
    %292 = vmatpush1.msra.mxu0 %v264
    %293 = vmatprep.subr.mxu0 0.0
    %294 = vmatpush1.msra.mxu0 %v265
    %295 = vmatprep.subr.mxu0 0.0
    %296 = vmatpush1.msra.mxu0 %v266
    %297 = vmatprep.subr.mxu0 0.0
    %298 = vmatpush1.msra.mxu0 %v267
    %299 = vmatprep.subr.mxu0 0.0
    %300 = vmatpush1.msra.mxu0 %v268
    %301 = vmatprep.subr.mxu0 0.0
    %302 = vmatpush1.msra.mxu0 %v269
    %303 = vmatprep.subr.mxu0 0.0
    %304 = vmatpush1.msra.mxu0 %v270
    %305 = vmatprep.subr.mxu0 0.0
    %306 = vmatpush1.msra.mxu0 %v271
    %307 = vmatprep.subr.mxu0 0.0
    %308 = vmatpush1.msra.mxu0 %v272
    %309 = vmatprep.subr.mxu0 0.0
    %310 = vmatpush1.msra.mxu0 %v273
    %311 = vmatprep.subr.mxu0 0.0
    %312 = vmatpush1.msra.mxu0 0.0
    %313 = vmatprep.subr.mxu0 0.0
    %314 = vmatpush1.msra.mxu0 0.0
    %315 = vmatprep.subr.mxu0 0.0
    %316 = vmatpush1.msra.mxu0 0.0
    %317 = vmatprep.subr.mxu0 0.0
    %318 = vmatpush1.msra.mxu0 0.0
    %319 = vmatprep.subr.mxu0 0.0
    %320 = vmatpush1.msra.mxu0 0.0
    %321 = vmatprep.subr.mxu0 0.0
    %322 = vmatpush1.msra.mxu0 0.0
    %323 = vmatprep.subr.mxu0 0.0
    %324 = vmatpush1.msra.mxu0 0.0
    %325 = vmatprep.subr.mxu0 0.0
    %326 = vmatpush1.msra.mxu0 0.0
    %327 = vmatprep.subr.mxu0 0.0
    %328 = vmatpush1.msra.mxu0 0.0
    %329 = vmatprep.subr.mxu0 0.0
    %330 = vmatpush1.msra.mxu0 0.0
    %331 = vmatprep.subr.mxu0 0.0
    %332 = vmatpush1.msra.mxu0 0.0
    %333 = vmatprep.subr.mxu0 0.0
    %334 = vmatpush1.msra.mxu0 0.0
    %335 = vmatprep.subr.mxu0 0.0
    %336 = vmatpush1.msra.mxu0 0.0
    %337 = vmatprep.subr.mxu0 0.0
    %338 = vmatpush1.msra.mxu0 0.0
    %339 = vmatprep.subr.mxu0 0.0
    %340 = vmatpush1.msra.mxu0 0.0
    %341 = vmatprep.subr.mxu0 0.0
    %342 = vmatpush1.msra.mxu0 0.0
    %343 = vmatprep.mubr.f32.mxu0 0.0
    %344 = vmatmul.mubr.f32.gmra.mrb[0].mxu0 %v242
    %v345 = vpop.f32.mrb[0].mxu0
    %v346 = vadd.f32 %v278, %v345
    %v347 = vpop.f32.mrb[0].mxu0
    %348 = vmatprep.mubr.f32.mxu0 0.0
    %349 = vmatmul.mubr.f32.gmra.mrb[0].mxu0 %v243
    %v350 = vpop.f32.mrb[0].mxu0
    %v351 = vadd.f32 %v278, %v350
    %v352 = vpop.f32.mrb[0].mxu0
    %353 = vmatprep.mubr.f32.mxu0 0.0
    %354 = vmatmul.mubr.f32.gmra.mrb[0].mxu0 %v244
    %v355 = vpop.f32.mrb[0].mxu0
    %v356 = vadd.f32 %v278, %v355
    %v357 = vpop.f32.mrb[0].mxu0
    %358 = vmatprep.mubr.f32.mxu0 0.0
    %359 = vmatmul.mubr.f32.gmra.mrb[0].mxu0 %v245
    %v360 = vpop.f32.mrb[0].mxu0
    %v361 = vadd.f32 %v278, %v360
    %v362 = vpop.f32.mrb[0].mxu0
    %363 = vmatprep.mubr.f32.mxu0 0.0
    %364 = vmatmul.mubr.f32.gmra.mrb[0].mxu0 %v246
    %v365 = vpop.f32.mrb[0].mxu0
    %v366 = vadd.f32 %v278, %v365
    %v367 = vpop.f32.mrb[0].mxu0
    %368 = vmatprep.mubr.f32.mxu0 0.0
    %369 = vmatmul.mubr.f32.gmra.mrb[0].mxu0 %v247
    %v370 = vpop.f32.mrb[0].mxu0
    %v371 = vadd.f32 %v278, %v370
    %v372 = vpop.f32.mrb[0].mxu0
    %373 = vmatprep.mubr.f32.mxu0 0.0
    %374 = vmatmul.mubr.f32.gmra.mrb[0].mxu0 %v248
    %v375 = vpop.f32.mrb[0].mxu0
    %v376 = vadd.f32 %v278, %v375
    %v377 = vpop.f32.mrb[0].mxu0
    %378 = vmatprep.mubr.f32.mxu0 0.0
    %379 = vmatmul.mubr.f32.gmra.mrb[0].mxu0 %v249
    %v380 = vpop.f32.mrb[0].mxu0
    %v381 = vadd.f32 %v278, %v380
    %v382 = vpop.f32.mrb[0].mxu0
    %383 = vmatprep.mubr.f32.mxu0 0.0
    %384 = vmatmul.mubr.f32.gmra.mrb[0].mxu0 %v250
    %v385 = vpop.f32.mrb[0].mxu0
    %v386 = vadd.f32 %v278, %v385
    %v387 = vpop.f32.mrb[0].mxu0
    %388 = vmatprep.mubr.f32.mxu0 0.0
    %389 = vmatmul.mubr.f32.gmra.mrb[0].mxu0 %v251
    %v390 = vpop.f32.mrb[0].mxu0
    %v391 = vadd.f32 %v278, %v390
    %v392 = vpop.f32.mrb[0].mxu0
    %393 = vmatprep.mubr.f32.mxu0 0.0
    %394 = vmatmul.mubr.f32.gmra.mrb[0].mxu0 %v252
    %v395 = vpop.f32.mrb[0].mxu0
    %v396 = vadd.f32 %v278, %v395
    %v397 = vpop.f32.mrb[0].mxu0
    %398 = vmatprep.mubr.f32.mxu0 0.0
    %399 = vmatmul.mubr.f32.gmra.mrb[0].mxu0 %v253
    %v400 = vpop.f32.mrb[0].mxu0
    %v401 = vadd.f32 %v278, %v400
    %v402 = vpop.f32.mrb[0].mxu0
    %403 = vmatprep.mubr.f32.mxu0 0.0
    %404 = vmatmul.mubr.f32.gmra.mrb[0].mxu0 %v254
    %v405 = vpop.f32.mrb[0].mxu0
    %v406 = vadd.f32 %v278, %v405
    %v407 = vpop.f32.mrb[0].mxu0
    %408 = vmatprep.mubr.f32.mxu0 0.0
    %409 = vmatmul.mubr.f32.gmra.mrb[0].mxu0 %v255
    %v410 = vpop.f32.mrb[0].mxu0
    %v411 = vadd.f32 %v278, %v410
    %v412 = vpop.f32.mrb[0].mxu0
    %413 = vmatprep.mubr.f32.mxu0 0.0
    %414 = vmatmul.mubr.f32.gmra.mrb[0].mxu0 %v256
    %v415 = vpop.f32.mrb[0].mxu0
    %v416 = vadd.f32 %v278, %v415
    %v417 = vpop.f32.mrb[0].mxu0
    %418 = vmatprep.mubr.f32.mxu0 0.0
    %419 = vmatmul.mubr.f32.gmra.mrb[0].mxu0 %v257
    %v420 = vpop.f32.mrb[0].mxu0
    %v421 = vadd.f32 %v278, %v420
    %v422 = vpop.f32.mrb[0].mxu0
    %423 = vdwg.mxu0
    %v424 = vmax.f32 %v346, 0.0
    %v425 = vmax.f32 %v351, 0.0
    %v426 = vmax.f32 %v356, 0.0
    %v427 = vmax.f32 %v361, 0.0
    %v428 = vmax.f32 %v366, 0.0
    %v429 = vmax.f32 %v371, 0.0
    %v430 = vmax.f32 %v376, 0.0
    %v431 = vmax.f32 %v381, 0.0
    %v432 = vmax.f32 %v386, 0.0
    %v433 = vmax.f32 %v391, 0.0
    %v434 = vmax.f32 %v396, 0.0
    %v435 = vmax.f32 %v401, 0.0
    %v436 = vmax.f32 %v406, 0.0
    %v437 = vmax.f32 %v411, 0.0
    %v438 = vmax.f32 %v416, 0.0
    %v439 = vmax.f32 %v421, 0.0
    %v440 = vld [vmem:[#allocation2 + $0x98] sm:$0xff]
    %v441 = vld [vmem:[#allocation2 + $0xa0] sm:$0xff]
    %v442 = vld [vmem:[#allocation2 + $0xa8] sm:$0xff]
    %v443 = vld [vmem:[#allocation2 + $0xb0] sm:$0xff]
    %v444 = vld [vmem:[#allocation2 + $0xb8] sm:$0xff]
    %v445 = vld [vmem:[#allocation2 + $0xc0] sm:$0xff]
    %v446 = vld [vmem:[#allocation2 + $0xc8] sm:$0xff]
    %v447 = vld [vmem:[#allocation2 + $0xd0] sm:$0xff]
    %v448 = vld [vmem:[#allocation2 + $0xd8] sm:$0xff]
    %v449 = vld [vmem:[#allocation2 + $0xe0] sm:$0xff]
    %v450 = vld [vmem:[#allocation2 + $0xe8] sm:$0xff]
    %v451 = vld [vmem:[#allocation2 + $0xf0] sm:$0xff]
    %v452 = vld [vmem:[#allocation2 + $0xf8] sm:$0xff]
    %v453 = vld [vmem:[#allocation2 + $0x100] sm:$0xff]
    %v454 = vld [vmem:[#allocation2 + $0x108] sm:$0xff]
    %v455 = vld [vmem:[#allocation2 + $0x110] sm:$0xff]
    %v456 = vld [vmem:[#allocation2 + $0x118] sm:$0x1]
    %v457 = vlaneseq
    %v458 = vshrl.u32 %v457, 7
    %v459 = vsub.s32 0, %v458
    %v460 = vrot.slane %v456, %v459
    %461 = vmatprep.subr.mxu0 0.0
    %462 = vmatpush1.msra.mxu0 %v440
    %463 = vmatprep.subr.mxu0 0.0
    %464 = vmatpush1.msra.mxu0 %v441
    %465 = vmatprep.subr.mxu0 0.0
    %466 = vmatpush1.msra.mxu0 %v442
    %467 = vmatprep.subr.mxu0 0.0
    %468 = vmatpush1.msra.mxu0 %v443
    %469 = vmatprep.subr.mxu0 0.0
    %470 = vmatpush1.msra.mxu0 %v444
    %471 = vmatprep.subr.mxu0 0.0
    %472 = vmatpush1.msra.mxu0 %v445
    %473 = vmatprep.subr.mxu0 0.0
    %474 = vmatpush1.msra.mxu0 %v446
    %475 = vmatprep.subr.mxu0 0.0
    %476 = vmatpush1.msra.mxu0 %v447
    %477 = vmatprep.subr.mxu0 0.0
    %478 = vmatpush1.msra.mxu0 %v448
    %479 = vmatprep.subr.mxu0 0.0
    %480 = vmatpush1.msra.mxu0 %v449
    %481 = vmatprep.subr.mxu0 0.0
    %482 = vmatpush1.msra.mxu0 %v450
    %483 = vmatprep.subr.mxu0 0.0
    %484 = vmatpush1.msra.mxu0 %v451
    %485 = vmatprep.subr.mxu0 0.0
    %486 = vmatpush1.msra.mxu0 %v452
    %487 = vmatprep.subr.mxu0 0.0
    %488 = vmatpush1.msra.mxu0 %v453
    %489 = vmatprep.subr.mxu0 0.0
    %490 = vmatpush1.msra.mxu0 %v454
    %491 = vmatprep.subr.mxu0 0.0
    %492 = vmatpush1.msra.mxu0 %v455
    %493 = vmatprep.subr.mxu0 0.0
    %494 = vmatpush1.msra.mxu0 0.0
    %495 = vmatprep.subr.mxu0 0.0
    %496 = vmatpush1.msra.mxu0 0.0
    %497 = vmatprep.subr.mxu0 0.0
    %498 = vmatpush1.msra.mxu0 0.0
    %499 = vmatprep.subr.mxu0 0.0
    %500 = vmatpush1.msra.mxu0 0.0
    %501 = vmatprep.subr.mxu0 0.0
    %502 = vmatpush1.msra.mxu0 0.0
    %503 = vmatprep.subr.mxu0 0.0
    %504 = vmatpush1.msra.mxu0 0.0
    %505 = vmatprep.subr.mxu0 0.0
    %506 = vmatpush1.msra.mxu0 0.0
    %507 = vmatprep.subr.mxu0 0.0
    %508 = vmatpush1.msra.mxu0 0.0
    %509 = vmatprep.subr.mxu0 0.0
    %510 = vmatpush1.msra.mxu0 0.0
    %511 = vmatprep.subr.mxu0 0.0
    %512 = vmatpush1.msra.mxu0 0.0
    %513 = vmatprep.subr.mxu0 0.0
    %514 = vmatpush1.msra.mxu0 0.0
    %515 = vmatprep.subr.mxu0 0.0
    %516 = vmatpush1.msra.mxu0 0.0
    %517 = vmatprep.subr.mxu0 0.0
    %518 = vmatpush1.msra.mxu0 0.0
    %519 = vmatprep.subr.mxu0 0.0
    %520 = vmatpush1.msra.mxu0 0.0
    %521 = vmatprep.subr.mxu0 0.0
    %522 = vmatpush1.msra.mxu0 0.0
    %523 = vmatprep.subr.mxu0 0.0
    %524 = vmatpush1.msra.mxu0 0.0
    %525 = vmatprep.mubr.f32.mxu0 0.0
    %526 = vmatmul.mubr.f32.gmra.mrb[0].mxu0 %v424
    %v527 = vpop.f32.mrb[0].mxu0
    %v528 = vadd.f32 %v460, %v527
    %v529 = vpop.f32.mrb[0].mxu0
    %530 = vmatprep.mubr.f32.mxu0 0.0
    %531 = vmatmul.mubr.f32.gmra.mrb[0].mxu0 %v425
    %v532 = vpop.f32.mrb[0].mxu0
    %v533 = vadd.f32 %v460, %v532
    %v534 = vpop.f32.mrb[0].mxu0
    %535 = vmatprep.mubr.f32.mxu0 0.0
    %536 = vmatmul.mubr.f32.gmra.mrb[0].mxu0 %v426
    %v537 = vpop.f32.mrb[0].mxu0
    %v538 = vadd.f32 %v460, %v537
    %v539 = vpop.f32.mrb[0].mxu0
    %540 = vmatprep.mubr.f32.mxu0 0.0
    %541 = vmatmul.mubr.f32.gmra.mrb[0].mxu0 %v427
    %v542 = vpop.f32.mrb[0].mxu0
    %v543 = vadd.f32 %v460, %v542
    %v544 = vpop.f32.mrb[0].mxu0
    %545 = vmatprep.mubr.f32.mxu0 0.0
    %546 = vmatmul.mubr.f32.gmra.mrb[0].mxu0 %v428
    %v547 = vpop.f32.mrb[0].mxu0
    %v548 = vadd.f32 %v460, %v547
    %v549 = vpop.f32.mrb[0].mxu0
    %550 = vmatprep.mubr.f32.mxu0 0.0
    %551 = vmatmul.mubr.f32.gmra.mrb[0].mxu0 %v429
    %v552 = vpop.f32.mrb[0].mxu0
    %v553 = vadd.f32 %v460, %v552
    %v554 = vpop.f32.mrb[0].mxu0
    %555 = vmatprep.mubr.f32.mxu0 0.0
    %556 = vmatmul.mubr.f32.gmra.mrb[0].mxu0 %v430
    %v557 = vpop.f32.mrb[0].mxu0
    %v558 = vadd.f32 %v460, %v557
    %v559 = vpop.f32.mrb[0].mxu0
    %560 = vmatprep.mubr.f32.mxu0 0.0
    %561 = vmatmul.mubr.f32.gmra.mrb[0].mxu0 %v431
    %v562 = vpop.f32.mrb[0].mxu0
    %v563 = vadd.f32 %v460, %v562
    %v564 = vpop.f32.mrb[0].mxu0
    %565 = vmatprep.mubr.f32.mxu0 0.0
    %566 = vmatmul.mubr.f32.gmra.mrb[0].mxu0 %v432
    %v567 = vpop.f32.mrb[0].mxu0
    %v568 = vadd.f32 %v460, %v567
    %v569 = vpop.f32.mrb[0].mxu0
    %570 = vmatprep.mubr.f32.mxu0 0.0
    %571 = vmatmul.mubr.f32.gmra.mrb[0].mxu0 %v433
    %v572 = vpop.f32.mrb[0].mxu0
    %v573 = vadd.f32 %v460, %v572
    %v574 = vpop.f32.mrb[0].mxu0
    %575 = vmatprep.mubr.f32.mxu0 0.0
    %576 = vmatmul.mubr.f32.gmra.mrb[0].mxu0 %v434
    %v577 = vpop.f32.mrb[0].mxu0
    %v578 = vadd.f32 %v460, %v577
    %v579 = vpop.f32.mrb[0].mxu0
    %580 = vmatprep.mubr.f32.mxu0 0.0
    %581 = vmatmul.mubr.f32.gmra.mrb[0].mxu0 %v435
    %v582 = vpop.f32.mrb[0].mxu0
    %v583 = vadd.f32 %v460, %v582
    %v584 = vpop.f32.mrb[0].mxu0
    %585 = vmatprep.mubr.f32.mxu0 0.0
    %586 = vmatmul.mubr.f32.gmra.mrb[0].mxu0 %v436
    %v587 = vpop.f32.mrb[0].mxu0
    %v588 = vadd.f32 %v460, %v587
    %v589 = vpop.f32.mrb[0].mxu0
    %590 = vmatprep.mubr.f32.mxu0 0.0
    %591 = vmatmul.mubr.f32.gmra.mrb[0].mxu0 %v437
    %v592 = vpop.f32.mrb[0].mxu0
    %v593 = vadd.f32 %v460, %v592
    %v594 = vpop.f32.mrb[0].mxu0
    %595 = vmatprep.mubr.f32.mxu0 0.0
    %596 = vmatmul.mubr.f32.gmra.mrb[0].mxu0 %v438
    %v597 = vpop.f32.mrb[0].mxu0
    %v598 = vadd.f32 %v460, %v597
    %v599 = vpop.f32.mrb[0].mxu0
    %600 = vmatprep.mubr.f32.mxu0 0.0
    %601 = vmatmul.mubr.f32.gmra.mrb[0].mxu0 %v439
    %v602 = vpop.f32.mrb[0].mxu0
    %v603 = vadd.f32 %v460, %v602
    %v604 = vpop.f32.mrb[0].mxu0
    %605 = vdwg.mxu0
    %v606 = vmax.f32 %v528, 0.0
    %v607 = vmax.f32 %v533, 0.0
    %v608 = vmax.f32 %v538, 0.0
    %v609 = vmax.f32 %v543, 0.0
    %v610 = vmax.f32 %v548, 0.0
    %v611 = vmax.f32 %v553, 0.0
    %v612 = vmax.f32 %v558, 0.0
    %v613 = vmax.f32 %v563, 0.0
    %v614 = vmax.f32 %v568, 0.0
    %v615 = vmax.f32 %v573, 0.0
    %v616 = vmax.f32 %v578, 0.0
    %v617 = vmax.f32 %v583, 0.0
    %v618 = vmax.f32 %v588, 0.0
    %v619 = vmax.f32 %v593, 0.0
    %v620 = vmax.f32 %v598, 0.0
    %v621 = vmax.f32 %v603, 0.0
    %v622 = vld [vmem:[#allocation2 + $0x120] sm:$0xff]
    %v623 = vld [vmem:[#allocation2 + $0x128] sm:$0xff]
    %v624 = vld [vmem:[#allocation2 + $0x130] sm:$0xff]
    %v625 = vld [vmem:[#allocation2 + $0x138] sm:$0xff]
    %v626 = vld [vmem:[#allocation2 + $0x140] sm:$0xff]
    %v627 = vld [vmem:[#allocation2 + $0x148] sm:$0xff]
    %v628 = vld [vmem:[#allocation2 + $0x150] sm:$0xff]
    %v629 = vld [vmem:[#allocation2 + $0x158] sm:$0xff]
    %v630 = vld [vmem:[#allocation2 + $0x160] sm:$0xff]
    %v631 = vld [vmem:[#allocation2 + $0x168] sm:$0xff]
    %v632 = vld [vmem:[#allocation2 + $0x170] sm:$0xff]
    %v633 = vld [vmem:[#allocation2 + $0x178] sm:$0xff]
    %v634 = vld [vmem:[#allocation2 + $0x180] sm:$0xff]
    %v635 = vld [vmem:[#allocation2 + $0x188] sm:$0xff]
    %v636 = vld [vmem:[#allocation2 + $0x190] sm:$0xff]
    %v637 = vld [vmem:[#allocation2 + $0x198] sm:$0xff]
    %v638 = vld [vmem:[#allocation2 + $0x1a0] sm:$0x1]
    %v639 = vlaneseq
    %v640 = vshrl.u32 %v639, 7
    %v641 = vsub.s32 0, %v640
    %v642 = vrot.slane %v638, %v641
    %643 = vmatprep.subr.mxu0 0.0
    %644 = vmatpush1.msra.mxu0 %v622
    %645 = vmatprep.subr.mxu0 0.0
    %646 = vmatpush1.msra.mxu0 %v623
    %647 = vmatprep.subr.mxu0 0.0
    %648 = vmatpush1.msra.mxu0 %v624
    %649 = vmatprep.subr.mxu0 0.0
    %650 = vmatpush1.msra.mxu0 %v625
    %651 = vmatprep.subr.mxu0 0.0
    %652 = vmatpush1.msra.mxu0 %v626
    %653 = vmatprep.subr.mxu0 0.0
    %654 = vmatpush1.msra.mxu0 %v627
    %655 = vmatprep.subr.mxu0 0.0
    %656 = vmatpush1.msra.mxu0 %v628
    %657 = vmatprep.subr.mxu0 0.0
    %658 = vmatpush1.msra.mxu0 %v629
    %659 = vmatprep.subr.mxu0 0.0
    %660 = vmatpush1.msra.mxu0 %v630
    %661 = vmatprep.subr.mxu0 0.0
    %662 = vmatpush1.msra.mxu0 %v631
    %663 = vmatprep.subr.mxu0 0.0
    %664 = vmatpush1.msra.mxu0 %v632
    %665 = vmatprep.subr.mxu0 0.0
    %666 = vmatpush1.msra.mxu0 %v633
    %667 = vmatprep.subr.mxu0 0.0
    %668 = vmatpush1.msra.mxu0 %v634
    %669 = vmatprep.subr.mxu0 0.0
    %670 = vmatpush1.msra.mxu0 %v635
    %671 = vmatprep.subr.mxu0 0.0
    %672 = vmatpush1.msra.mxu0 %v636
    %673 = vmatprep.subr.mxu0 0.0
    %674 = vmatpush1.msra.mxu0 %v637
    %675 = vmatprep.subr.mxu0 0.0
    %676 = vmatpush1.msra.mxu0 0.0
    %677 = vmatprep.subr.mxu0 0.0
    %678 = vmatpush1.msra.mxu0 0.0
    %679 = vmatprep.subr.mxu0 0.0
    %680 = vmatpush1.msra.mxu0 0.0
    %681 = vmatprep.subr.mxu0 0.0
    %682 = vmatpush1.msra.mxu0 0.0
    %683 = vmatprep.subr.mxu0 0.0
    %684 = vmatpush1.msra.mxu0 0.0
    %685 = vmatprep.subr.mxu0 0.0
    %686 = vmatpush1.msra.mxu0 0.0
    %687 = vmatprep.subr.mxu0 0.0
    %688 = vmatpush1.msra.mxu0 0.0
    %689 = vmatprep.subr.mxu0 0.0
    %690 = vmatpush1.msra.mxu0 0.0
    %691 = vmatprep.subr.mxu0 0.0
    %692 = vmatpush1.msra.mxu0 0.0
    %693 = vmatprep.subr.mxu0 0.0
    %694 = vmatpush1.msra.mxu0 0.0
    %695 = vmatprep.subr.mxu0 0.0
    %696 = vmatpush1.msra.mxu0 0.0
    %697 = vmatprep.subr.mxu0 0.0
    %698 = vmatpush1.msra.mxu0 0.0
    %699 = vmatprep.subr.mxu0 0.0
    %700 = vmatpush1.msra.mxu0 0.0
    %701 = vmatprep.subr.mxu0 0.0
    %702 = vmatpush1.msra.mxu0 0.0
    %703 = vmatprep.subr.mxu0 0.0
    %704 = vmatpush1.msra.mxu0 0.0
    %705 = vmatprep.subr.mxu0 0.0
    %706 = vmatpush1.msra.mxu0 0.0
    %707 = vmatprep.mubr.f32.mxu0 0.0
    %708 = vmatmul.mubr.f32.gmra.mrb[0].mxu0 %v606
    %v709 = vpop.f32.mrb[0].mxu0
    %v710 = vadd.f32 %v642, %v709
    %v711 = vpop.f32.mrb[0].mxu0
    %712 = vmatprep.mubr.f32.mxu0 0.0
    %713 = vmatmul.mubr.f32.gmra.mrb[0].mxu0 %v607
    %v714 = vpop.f32.mrb[0].mxu0
    %v715 = vadd.f32 %v642, %v714
    %v716 = vpop.f32.mrb[0].mxu0
    %717 = vmatprep.mubr.f32.mxu0 0.0
    %718 = vmatmul.mubr.f32.gmra.mrb[0].mxu0 %v608
    %v719 = vpop.f32.mrb[0].mxu0
    %v720 = vadd.f32 %v642, %v719
    %v721 = vpop.f32.mrb[0].mxu0
    %722 = vmatprep.mubr.f32.mxu0 0.0
    %723 = vmatmul.mubr.f32.gmra.mrb[0].mxu0 %v609
    %v724 = vpop.f32.mrb[0].mxu0
    %v725 = vadd.f32 %v642, %v724
    %v726 = vpop.f32.mrb[0].mxu0
    %727 = vmatprep.mubr.f32.mxu0 0.0
    %728 = vmatmul.mubr.f32.gmra.mrb[0].mxu0 %v610
    %v729 = vpop.f32.mrb[0].mxu0
    %v730 = vadd.f32 %v642, %v729
    %v731 = vpop.f32.mrb[0].mxu0
    %732 = vmatprep.mubr.f32.mxu0 0.0
    %733 = vmatmul.mubr.f32.gmra.mrb[0].mxu0 %v611
    %v734 = vpop.f32.mrb[0].mxu0
    %v735 = vadd.f32 %v642, %v734
    %v736 = vpop.f32.mrb[0].mxu0
    %737 = vmatprep.mubr.f32.mxu0 0.0
    %738 = vmatmul.mubr.f32.gmra.mrb[0].mxu0 %v612
    %v739 = vpop.f32.mrb[0].mxu0
    %v740 = vadd.f32 %v642, %v739
    %v741 = vpop.f32.mrb[0].mxu0
    %742 = vmatprep.mubr.f32.mxu0 0.0
    %743 = vmatmul.mubr.f32.gmra.mrb[0].mxu0 %v613
    %v744 = vpop.f32.mrb[0].mxu0
    %v745 = vadd.f32 %v642, %v744
    %v746 = vpop.f32.mrb[0].mxu0
    %747 = vmatprep.mubr.f32.mxu0 0.0
    %748 = vmatmul.mubr.f32.gmra.mrb[0].mxu0 %v614
    %v749 = vpop.f32.mrb[0].mxu0
    %v750 = vadd.f32 %v642, %v749
    %v751 = vpop.f32.mrb[0].mxu0
    %752 = vmatprep.mubr.f32.mxu0 0.0
    %753 = vmatmul.mubr.f32.gmra.mrb[0].mxu0 %v615
    %v754 = vpop.f32.mrb[0].mxu0
    %v755 = vadd.f32 %v642, %v754
    %v756 = vpop.f32.mrb[0].mxu0
    %757 = vmatprep.mubr.f32.mxu0 0.0
    %758 = vmatmul.mubr.f32.gmra.mrb[0].mxu0 %v616
    %v759 = vpop.f32.mrb[0].mxu0
    %v760 = vadd.f32 %v642, %v759
    %v761 = vpop.f32.mrb[0].mxu0
    %762 = vmatprep.mubr.f32.mxu0 0.0
    %763 = vmatmul.mubr.f32.gmra.mrb[0].mxu0 %v617
    %v764 = vpop.f32.mrb[0].mxu0
    %v765 = vadd.f32 %v642, %v764
    %v766 = vpop.f32.mrb[0].mxu0
    %767 = vmatprep.mubr.f32.mxu0 0.0
    %768 = vmatmul.mubr.f32.gmra.mrb[0].mxu0 %v618
    %v769 = vpop.f32.mrb[0].mxu0
    %v770 = vadd.f32 %v642, %v769
    %v771 = vpop.f32.mrb[0].mxu0
    %772 = vmatprep.mubr.f32.mxu0 0.0
    %773 = vmatmul.mubr.f32.gmra.mrb[0].mxu0 %v619
    %v774 = vpop.f32.mrb[0].mxu0
    %v775 = vadd.f32 %v642, %v774
    %v776 = vpop.f32.mrb[0].mxu0
    %777 = vmatprep.mubr.f32.mxu0 0.0
    %778 = vmatmul.mubr.f32.gmra.mrb[0].mxu0 %v620
    %v779 = vpop.f32.mrb[0].mxu0
    %v780 = vadd.f32 %v642, %v779
    %v781 = vpop.f32.mrb[0].mxu0
    %782 = vmatprep.mubr.f32.mxu0 0.0
    %783 = vmatmul.mubr.f32.gmra.mrb[0].mxu0 %v621
    %v784 = vpop.f32.mrb[0].mxu0
    %v785 = vadd.f32 %v642, %v784
    %v786 = vpop.f32.mrb[0].mxu0
    %787 = vdwg.mxu0
    %788 = vmax.xlane.f32.xlu0 %v710
    %v789 = vpop.xlane.xlu0 %788
    %790 = vmax.xlane.f32.xlu0 %v715
    %v791 = vpop.xlane.xlu0 %790
    %792 = vmax.xlane.f32.xlu0 %v720
    %v793 = vpop.xlane.xlu0 %792
    %794 = vmax.xlane.f32.xlu0 %v725
    %v795 = vpop.xlane.xlu0 %794
    %796 = vmax.xlane.f32.xlu0 %v730
    %v797 = vpop.xlane.xlu0 %796
    %798 = vmax.xlane.f32.xlu0 %v735
    %v799 = vpop.xlane.xlu0 %798
    %800 = vmax.xlane.f32.xlu0 %v740
    %v801 = vpop.xlane.xlu0 %800
    %802 = vmax.xlane.f32.xlu0 %v745
    %v803 = vpop.xlane.xlu0 %802
    %804 = vmax.xlane.f32.xlu0 %v750
    %v805 = vpop.xlane.xlu0 %804
    %806 = vmax.xlane.f32.xlu0 %v755
    %v807 = vpop.xlane.xlu0 %806
    %808 = vmax.xlane.f32.xlu0 %v760
    %v809 = vpop.xlane.xlu0 %808
    %810 = vmax.xlane.f32.xlu0 %v765
    %v811 = vpop.xlane.xlu0 %810
    %812 = vmax.xlane.f32.xlu0 %v770
    %v813 = vpop.xlane.xlu0 %812
    %814 = vmax.xlane.f32.xlu0 %v775
    %v815 = vpop.xlane.xlu0 %814
    %816 = vmax.xlane.f32.xlu0 %v780
    %v817 = vpop.xlane.xlu0 %816
    %818 = vmax.xlane.f32.xlu0 %v785
    %v819 = vpop.xlane.xlu0 %818
    %v820 = vsub.f32 %v710, %v789
    %v821 = vsub.f32 %v715, %v791
    %v822 = vsub.f32 %v720, %v793
    %v823 = vsub.f32 %v725, %v795
    %v824 = vsub.f32 %v730, %v797
    %v825 = vsub.f32 %v735, %v799
    %v826 = vsub.f32 %v740, %v801
    %v827 = vsub.f32 %v745, %v803
    %v828 = vsub.f32 %v750, %v805
    %v829 = vsub.f32 %v755, %v807
    %v830 = vsub.f32 %v760, %v809
    %v831 = vsub.f32 %v765, %v811
    %v832 = vsub.f32 %v770, %v813
    %v833 = vsub.f32 %v775, %v815
    %v834 = vsub.f32 %v780, %v817
    %v835 = vsub.f32 %v785, %v819
    %v836 = vmul.f32 %v820, 1.442695
    %v837 = vpow.pop %v836
    %v838 = vmul.f32 %v821, 1.442695
    %v839 = vpow.pop %v838
    %v840 = vmul.f32 %v822, 1.442695
    %v841 = vpow.pop %v840
    %v842 = vmul.f32 %v823, 1.442695
    %v843 = vpow.pop %v842
    %v844 = vmul.f32 %v824, 1.442695
    %v845 = vpow.pop %v844
    %v846 = vmul.f32 %v825, 1.442695
    %v847 = vpow.pop %v846
    %v848 = vmul.f32 %v826, 1.442695
    %v849 = vpow.pop %v848
    %v850 = vmul.f32 %v827, 1.442695
    %v851 = vpow.pop %v850
    %v852 = vmul.f32 %v828, 1.442695
    %v853 = vpow.pop %v852
    %v854 = vmul.f32 %v829, 1.442695
    %v855 = vpow.pop %v854
    %v856 = vmul.f32 %v830, 1.442695
    %v857 = vpow.pop %v856
    %v858 = vmul.f32 %v831, 1.442695
    %v859 = vpow.pop %v858
    %v860 = vmul.f32 %v832, 1.442695
    %v861 = vpow.pop %v860
    %v862 = vmul.f32 %v833, 1.442695
    %v863 = vpow.pop %v862
    %v864 = vmul.f32 %v834, 1.442695
    %v865 = vpow.pop %v864
    %v866 = vmul.f32 %v835, 1.442695
    %v867 = vpow.pop %v866
    %868 = vadd.xlane.f32.xlu0 %v837
    %v869 = vpop.xlane.xlu0 %868
    %870 = vadd.xlane.f32.xlu0 %v839
    %v871 = vpop.xlane.xlu0 %870
    %872 = vadd.xlane.f32.xlu0 %v841
    %v873 = vpop.xlane.xlu0 %872
    %874 = vadd.xlane.f32.xlu0 %v843
    %v875 = vpop.xlane.xlu0 %874
    %876 = vadd.xlane.f32.xlu0 %v845
    %v877 = vpop.xlane.xlu0 %876
    %878 = vadd.xlane.f32.xlu0 %v847
    %v879 = vpop.xlane.xlu0 %878
    %880 = vadd.xlane.f32.xlu0 %v849
    %v881 = vpop.xlane.xlu0 %880
    %882 = vadd.xlane.f32.xlu0 %v851
    %v883 = vpop.xlane.xlu0 %882
    %884 = vadd.xlane.f32.xlu0 %v853
    %v885 = vpop.xlane.xlu0 %884
    %886 = vadd.xlane.f32.xlu0 %v855
    %v887 = vpop.xlane.xlu0 %886
    %888 = vadd.xlane.f32.xlu0 %v857
    %v889 = vpop.xlane.xlu0 %888
    %890 = vadd.xlane.f32.xlu0 %v859
    %v891 = vpop.xlane.xlu0 %890
    %892 = vadd.xlane.f32.xlu0 %v861
    %v893 = vpop.xlane.xlu0 %892
    %894 = vadd.xlane.f32.xlu0 %v863
    %v895 = vpop.xlane.xlu0 %894
    %896 = vadd.xlane.f32.xlu0 %v865
    %v897 = vpop.xlane.xlu0 %896
    %898 = vadd.xlane.f32.xlu0 %v867
    %v899 = vpop.xlane.xlu0 %898
    %v900 = vrcp.pop %v869
    %v901 = vrcp.pop %v871
    %v902 = vrcp.pop %v873
    %v903 = vrcp.pop %v875
    %v904 = vrcp.pop %v877
    %v905 = vrcp.pop %v879
    %v906 = vrcp.pop %v881
    %v907 = vrcp.pop %v883
    %v908 = vrcp.pop %v885
    %v909 = vrcp.pop %v887
    %v910 = vrcp.pop %v889
    %v911 = vrcp.pop %v891
    %v912 = vrcp.pop %v893
    %v913 = vrcp.pop %v895
    %v914 = vrcp.pop %v897
    %v915 = vrcp.pop %v899
    %v916 = vmul.f32 %v837, %v900
    %v917 = vmul.f32 %v839, %v901
    %v918 = vmul.f32 %v841, %v902
    %v919 = vmul.f32 %v843, %v903
    %v920 = vmul.f32 %v845, %v904
    %v921 = vmul.f32 %v847, %v905
    %v922 = vmul.f32 %v849, %v906
    %v923 = vmul.f32 %v851, %v907
    %v924 = vmul.f32 %v853, %v908
    %v925 = vmul.f32 %v855, %v909
    %v926 = vmul.f32 %v857, %v910
    %v927 = vmul.f32 %v859, %v911
    %v928 = vmul.f32 %v861, %v912
    %v929 = vmul.f32 %v863, %v913
    %v930 = vmul.f32 %v865, %v914
    %v931 = vmul.f32 %v867, %v915
    %932 = vxpose.xlu0.b32.start [1/16] %v916, 128
    %933 = vxpose.xlu0.b32.cont [2/16] %v917, 128
    %934 = vxpose.xlu0.b32.cont [3/16] %v918, 128
    %935 = vxpose.xlu0.b32.cont [4/16] %v919, 128
    %936 = vxpose.xlu0.b32.cont [5/16] %v920, 128
    %937 = vxpose.xlu0.b32.cont [6/16] %v921, 128
    %938 = vxpose.xlu0.b32.cont [7/16] %v922, 128
    %939 = vxpose.xlu0.b32.cont [8/16] %v923, 128
    %940 = vxpose.xlu0.b32.cont [9/16] %v924, 128
    %941 = vxpose.xlu0.b32.cont [10/16] %v925, 128
    %942 = vxpose.xlu0.b32.cont [11/16] %v926, 128
    %943 = vxpose.xlu0.b32.cont [12/16] %v927, 128
    %944 = vxpose.xlu0.b32.cont [13/16] %v928, 128
    %945 = vxpose.xlu0.b32.cont [14/16] %v929, 128
    %946 = vxpose.xlu0.b32.cont [15/16] %v930, 128
    %947 = vxpose.xlu0.b32.end [16/16] %v931, 128
    %v948 = vpop.trf.xlu0
    %v949 = vpop.trf.xlu0
    %v950 = vpop.trf.xlu0
    %v951 = vpop.trf.xlu0
    %v952 = vpop.trf.xlu0
    %v953 = vpop.trf.xlu0
    %v954 = vpop.trf.xlu0
    %v955 = vpop.trf.xlu0
    %v956 = vpop.trf.xlu0
    %v957 = vpop.trf.xlu0
    %v958 = vpop.trf.xlu0
    %v959 = vpop.trf.xlu0
    %v960 = vpop.trf.xlu0
    %v961 = vpop.trf.xlu0
    %v962 = vpop.trf.xlu0
    %v963 = vpop.trf.xlu0
    %964 = vst [vmem:[#allocation5] sm:$0xff] %v948
    // Predicated region
    $region14: #{tpu_custom_call.1} parent=1 // pred_check
      _
    $region15: #{tpu_custom_call.1} parent=1 // pred_check_branch
      %966 = sbr.rel (0) target = $region17
    $region16: #{tpu_custom_call.1} parent=1 // pred_region
      %s968 = ssub.s32 128, 128
      %969 = vsyncadd [#allocation4], %s968
      %s971 = sshll.u32 [#allocation5], 4
      %s972 = int_to_ptr.vmem [resolvable:$true] %s971
      %974 = dma.vmem_to_hbm [thread:$0]  %s972, 128, %s2, [#allocation4]
    $region17: #{tpu_custom_call.1} parent=1 // pred_fallthru
      _
    // Predicated region
    $region18: #{tpu_custom_call.1} parent=1 // pred_check
      _
    $region19: #{tpu_custom_call.1} parent=1 // pred_check_branch
      %976 = sbr.rel (0) target = $region21
    $region20: #{tpu_custom_call.1} parent=1 // pred_region
      %977 = dma.done [#allocation4], 128
    $region21: #{tpu_custom_call.1} parent=1 // pred_fallthru
      _
    %978 = vsyncpa [#allocation3], 1
    %979 = vsyncpa [#allocation4], 1

</llo_original>
